<compile_context>
chip_gen: v7x
topology: tpu7x:2x2x1
jax: 0.10.0
libtpu: 0.0.40
codegen_flags: <defaults>
</compile_context>

<pallas_src>
import jax
import jax.numpy as jnp
import numpy as np
from jax import lax
from jax.experimental import pallas as pl
from jax.experimental.pallas import tpu as pltpu


def rw_kernel(x_ref, w_ref, b_ref, gamma_ref, out_ref, energy_ref,
              v_s, q_s, k_s):
    # x_ref: (N, Cp)   w_ref: (Cp, F)   b_ref: (1, F)   F = Cp + 2*C8, cols [v|q|k]
    # out_ref: (TQ, Cp)   energy_ref: (TQ, N)
    # v_s: (N, Cp)   q_s: (N, C8)   k_s: (N, C8)   -- resident per batch element
    n, cp = x_ref.shape
    tq = out_ref.shape[0]
    c8 = q_s.shape[1]
    qi = pl.program_id(1)

    # Fused 1x1-conv projections: one lane-dense MXU pass over x per batch
    # element, split into the resident V / Q / K scratch buffers.
    @pl.when(qi == 0)
    def _():
        proj = (jnp.dot(x_ref[...], w_ref[...],
                        preferred_element_type=jnp.float32)
                + b_ref[...])                              # (N, F)
        v_s[...] = proj[:, 0:cp]
        q_s[...] = proj[:, cp:cp + c8]
        k_s[...] = proj[:, cp + c8:cp + 2 * c8]

    start = pl.multiple_of(qi * tq, tq)
    q = q_s[pl.ds(start, tq), :]                           # (TQ, C8)

    # energy[i, j] = <q_i, k_j>: contract the channel dims directly, no k.T copy.
    energy = lax.dot_general(
        q, k_s[...], dimension_numbers=(((1,), (1,)), ((), ())),
        preferred_element_type=jnp.float32)                # (TQ, N)
    energy_ref[...] = energy

    # Row-wise softmax; reciprocal goes to the EUP slot (approx).
    m = jnp.max(energy, axis=-1, keepdims=True)
    e = jnp.exp(energy - m)
    attn = e * pl.reciprocal(jnp.sum(e, axis=-1, keepdims=True), approx=True)

    out = jnp.dot(attn, v_s[...], preferred_element_type=jnp.float32)  # (TQ, Cp)

    # gamma * out + x  (padded channels stay exactly zero).
    x_tile = x_ref[pl.ds(start, tq), :]
    out_ref[...] = gamma_ref[0] * out + x_tile


def _round_up(v, m):
    return (v + m - 1) // m * m


def _pick_tq(n, cp, c8, budget_bytes=40 * 1024 * 1024):
    """Largest query tile keeping double-buffered blocks + resident scratch in VMEM."""
    for cand in (1024, 512, 256, 128):
        if n % cand == 0:
            need = 4 * (2 * cand * n          # energy out tile, double-buffered
                        + 2 * cand * cp       # out tile, double-buffered
                        + n * (cp + 2 * c8)   # resident V/Q/K scratch
                        + 2 * n * cp)         # x block, double-buffered across b
            if need <= budget_bytes:
                return cand
    return n   # tiny N: single tile per batch element


def rw_module_forward(x_nchw, params, *, tq=None):
    """x_nchw: (B, C, H, W) float32.  Returns (out_nchw, energy)."""
    B, C, H, W = x_nchw.shape
    N = H * W
    C8 = params["wq"].shape[0]
    Cp = _round_up(C, 128)               # lane-dense channel dim
    F = Cp + 2 * C8

    if tq is None:
        tq = _pick_tq(N, Cp, C8)
    assert N % tq == 0, (N, tq)
    n_qt = N // tq

    # glue: NCHW -> (B, N, C) -> zero-pad channels to Cp
    x_nc = jnp.transpose(x_nchw.reshape(B, C, N), (0, 2, 1))
    if Cp != C:
        x_nc = jnp.pad(x_nc, ((0, 0), (0, 0), (0, Cp - C)))

    # Fuse the three 1x1-conv weights into one (Cp, F) matrix, columns [v|q|k];
    # rows of padded input channels are zero so the math is unchanged.
    wv_t = jnp.zeros((Cp, Cp), jnp.float32).at[:C, :C].set(params["wv"].T)
    wq_t = jnp.zeros((Cp, C8), jnp.float32).at[:C, :].set(params["wq"].T)
    wk_t = jnp.zeros((Cp, C8), jnp.float32).at[:C, :].set(params["wk"].T)
    w_fused = jnp.concatenate([wv_t, wq_t, wk_t], axis=1)          # (Cp, F)
    bv_p = jnp.zeros((Cp,), jnp.float32).at[:C].set(params["bv"])
    b_fused = jnp.concatenate([bv_p, params["bq"], params["bk"]]).reshape(1, F)
    gamma = params["gamma"].astype(jnp.float32)                    # (1,)

    # Explicit VMEM limit sized from the tiles (kept safe for v7x's 64 MiB).
    vmem_need = 4 * (2 * tq * N + 2 * tq * Cp + N * (Cp + 2 * C8)
                     + 2 * N * Cp + 2 * (Cp * F + F))
    vmem_limit = int(min(max(vmem_need + (4 << 20), 32 << 20), 48 << 20))

    out_p, energy = pl.pallas_call(
        rw_kernel,
        out_shape=(
            jax.ShapeDtypeStruct((B, N, Cp), jnp.float32),
            jax.ShapeDtypeStruct((B, N, N), jnp.float32),
        ),
        grid_spec=pltpu.PrefetchScalarGridSpec(
            num_scalar_prefetch=0,
            grid=(B, n_qt),
            in_specs=[
                pl.BlockSpec((None, N, Cp), lambda b, q: (b, 0, 0)),   # x (resident per batch)
                pl.BlockSpec((Cp, F), lambda b, q: (0, 0)),            # fused weight
                pl.BlockSpec((1, F), lambda b, q: (0, 0)),             # fused bias
                pl.BlockSpec(memory_space=pltpu.MemorySpace.SMEM),     # gamma scalar
            ],
            out_specs=[
                pl.BlockSpec((None, tq, Cp), lambda b, q: (b, q, 0)),  # out tile
                pl.BlockSpec((None, tq, N), lambda b, q: (b, q, 0)),   # energy tile
            ],
            scratch_shapes=[
                pltpu.VMEM((N, Cp), jnp.float32),   # resident V
                pltpu.VMEM((N, C8), jnp.float32),   # resident Q
                pltpu.VMEM((N, C8), jnp.float32),   # resident K
            ],
        ),
        compiler_params=pltpu.CompilerParams(
            dimension_semantics=("parallel", "arbitrary"),
            vmem_limit_bytes=vmem_limit,
        ),
    )(x_nc, w_fused, b_fused, gamma)

    # glue: (B, N, Cp) -> drop channel padding -> NCHW
    out_nchw = jnp.transpose(out_p[..., :C], (0, 2, 1)).reshape(B, C, H, W)
    return out_nchw, energy


def reference_forward(x_nchw, params):
    """Pure-JAX reference mirroring the PyTorch forward (shrink_factor=1)."""
    B, C, H, W = x_nchw.shape
    N = H * W
    x_flat = x_nchw.reshape(B, C, N)                             # (B, C, N)
    q = jnp.einsum("oc,bcn->bon", params["wq"], x_flat) + params["bq"][None, :, None]
    k = jnp.einsum("oc,bcn->bon", params["wk"], x_flat) + params["bk"][None, :, None]
    v = jnp.einsum("oc,bcn->bon", params["wv"], x_flat) + params["bv"][None, :, None]
    proj_query = jnp.transpose(q, (0, 2, 1))                     # (B, N, C8)
    energy = jnp.einsum("bik,bkj->bij", proj_query, k)           # (B, N, N)
    attention = jax.nn.softmax(energy, axis=-1)
    out = jnp.einsum("bcj,bij->bci", v, attention)               # (B, C, N)
    out = out.reshape(B, C, H, W)
    out = params["gamma"][0] * out + x_nchw
    return out, energy


if __name__ == "__main__":
    B, C, H, W = 2, 16, 16, 16        # in_dim=16 -> query/key channels = 2, N = 256
    C8 = C // 8

    key = jax.random.PRNGKey(0)
    ks = jax.random.split(key, 8)
    params = {
        "wq": 0.1 * jax.random.normal(ks[0], (C8, C), jnp.float32),
        "bq": 0.1 * jax.random.normal(ks[1], (C8,), jnp.float32),
        "wk": 0.1 * jax.random.normal(ks[2], (C8, C), jnp.float32),
        "bk": 0.1 * jax.random.normal(ks[3], (C8,), jnp.float32),
        "wv": 0.1 * jax.random.normal(ks[4], (C, C), jnp.float32),
        "bv": 0.1 * jax.random.normal(ks[5], (C,), jnp.float32),
        # PyTorch inits gamma to 0; use a deterministic nonzero value so the
        # attention branch actually contributes to the output.
        "gamma": jnp.array([0.5], jnp.float32),
    }
    x = jax.random.normal(ks[6], (B, C, H, W), jnp.float32)

    # tq=128 -> N // tq = 2 query tiles per batch, exercising the resident
    # K/V/Q scratch reuse across grid steps.
    out, energy = rw_module_forward(x, params, tq=128)
    out = jax.block_until_ready(out)
    energy = jax.block_until_ready(energy)

    out_ref, energy_ref = reference_forward(x, params)
    np.testing.assert_allclose(np.asarray(energy), np.asarray(energy_ref),
                               rtol=1e-5, atol=1e-5)
    # softmax denominator uses the EUP approximate reciprocal -> slightly
    # looser tolerance on the attention output.
    np.testing.assert_allclose(np.asarray(out), np.asarray(out_ref),
                               rtol=2e-3, atol=2e-3)

    print("KERNEL_OK")
</pallas_src>

<mosaic_0001>
module attributes {stable_mosaic.version = 11 : i64} {
  func.func @rw_kernel(%arg0: i32, %arg1: i32, %arg2: memref<1x256x128xf32, #tpu.memory_space<vmem>>, %arg3: memref<128x132xf32, #tpu.memory_space<vmem>>, %arg4: memref<1x132xf32, #tpu.memory_space<vmem>>, %arg5: memref<1xf32, #tpu.memory_space<smem>>, %arg6: memref<1x128x128xf32, #tpu.memory_space<vmem>>, %arg7: memref<1x128x256xf32, #tpu.memory_space<vmem>>, %arg8: memref<256x128xf32, #tpu.memory_space<vmem>>, %arg9: memref<256x2xf32, #tpu.memory_space<vmem>>, %arg10: memref<256x2xf32, #tpu.memory_space<vmem>>) attributes {dimension_semantics = [#tpu.dimension_semantics<parallel>, #tpu.dimension_semantics<arbitrary>], iteration_bounds = array<i64: 2, 2>, scalar_prefetch = 0 : i64, scratch_operands = 3 : i64, tpu.core_type = #tpu.core_type<tc>, window_params = [{transform_indices = @transform_0, window_bounds = array<i64: 1, 256, 128>}, {pipeline_mode = #tpu.pipeline_mode<synchronous>, transform_indices = @transform_1, window_bounds = array<i64: 128, 132>}, {pipeline_mode = #tpu.pipeline_mode<synchronous>, transform_indices = @transform_2, window_bounds = array<i64: 1, 132>}, {transform_indices = @transform_3, window_bounds = array<i64: 1>}, {transform_indices = @transform_4, window_bounds = array<i64: 1, 128, 128>}, {transform_indices = @transform_5, window_bounds = array<i64: 1, 128, 256>}]} {
    %c0_i32 = arith.constant 0 : i32
    %0 = arith.cmpi eq, %arg1, %c0_i32 : i32
    %1 = arith.extui %0 : i1 to i32
    %c0_i32_0 = arith.constant 0 : i32
    %2 = arith.cmpi ne, %1, %c0_i32_0 : i32
    scf.if %2 {
      %c0_17 = arith.constant 0 : index
      %c0_18 = arith.constant 0 : index
      %c0_19 = arith.constant 0 : index
      %34 = vector.load %arg2[%c0_17, %c0_18, %c0_19] : memref<1x256x128xf32, #tpu.memory_space<vmem>>, vector<1x256x128xf32>
      %35 = vector.shape_cast %34 : vector<1x256x128xf32> to vector<256x128xf32>
      %c0_20 = arith.constant 0 : index
      %c0_21 = arith.constant 0 : index
      %36 = vector.load %arg3[%c0_20, %c0_21] : memref<128x132xf32, #tpu.memory_space<vmem>>, vector<128x132xf32>
      %cst_22 = arith.constant dense<0.000000e+00> : vector<256x132xf32>
      %37 = tpu.matmul %35, %36, %cst_22 {dimension_numbers = #tpu.dot_dimension_numbers<[1], [0], [0], [1], [0, 0, 1, 1], [], []>} : vector<256x128xf32>, vector<128x132xf32>, vector<256x132xf32> -> vector<256x132xf32>
      %c0_23 = arith.constant 0 : index
      %c0_24 = arith.constant 0 : index
      %38 = vector.load %arg4[%c0_23, %c0_24] : memref<1x132xf32, #tpu.memory_space<vmem>>, vector<1x132xf32>
      %39 = vector.broadcast %38 : vector<1x132xf32> to vector<256x132xf32>
      %40 = arith.addf %37, %39 : vector<256x132xf32>
      %41 = vector.extract_strided_slice %40 {offsets = [0, 0], sizes = [256, 128], strides = [1, 1]} : vector<256x132xf32> to vector<256x128xf32>
      %c0_25 = arith.constant 0 : index
      %c0_26 = arith.constant 0 : index
      %42 = vector.load %arg8[%c0_25, %c0_26] : memref<256x128xf32, #tpu.memory_space<vmem>>, vector<256x128xf32>
      tpu.vector_store %arg8[%c0_25, %c0_26], %41 {strides = array<i32>} : memref<256x128xf32, #tpu.memory_space<vmem>>, vector<256x128xf32>,
      %43 = vector.extract_strided_slice %40 {offsets = [0, 128], sizes = [256, 2], strides = [1, 1]} : vector<256x132xf32> to vector<256x2xf32>
      %c0_27 = arith.constant 0 : index
      %c0_28 = arith.constant 0 : index
      %44 = vector.load %arg9[%c0_27, %c0_28] : memref<256x2xf32, #tpu.memory_space<vmem>>, vector<256x2xf32>
      tpu.vector_store %arg9[%c0_27, %c0_28], %43 {strides = array<i32>} : memref<256x2xf32, #tpu.memory_space<vmem>>, vector<256x2xf32>,
      %45 = vector.extract_strided_slice %40 {offsets = [0, 130], sizes = [256, 2], strides = [1, 1]} : vector<256x132xf32> to vector<256x2xf32>
      %c0_29 = arith.constant 0 : index
      %c0_30 = arith.constant 0 : index
      %46 = vector.load %arg10[%c0_29, %c0_30] : memref<256x2xf32, #tpu.memory_space<vmem>>, vector<256x2xf32>
      tpu.vector_store %arg10[%c0_29, %c0_30], %45 {strides = array<i32>} : memref<256x2xf32, #tpu.memory_space<vmem>>, vector<256x2xf32>,
    } else {
    }
    %c128_i32 = arith.constant 128 : i32
    %3 = arith.muli %arg1, %c128_i32 : i32
    %4 = tpu.assume_multiple %3, 128 : i32
    %5 = arith.index_cast %4 : i32 to index
    %c0 = arith.constant 0 : index
    %6 = vector.load %arg9[%5, %c0] : memref<256x2xf32, #tpu.memory_space<vmem>>, vector<128x2xf32>
    %c0_1 = arith.constant 0 : index
    %c0_2 = arith.constant 0 : index
    %7 = vector.load %arg10[%c0_1, %c0_2] : memref<256x2xf32, #tpu.memory_space<vmem>>, vector<256x2xf32>
    %cst = arith.constant dense<0.000000e+00> : vector<128x256xf32>
    %8 = tpu.matmul %6, %7, %cst {dimension_numbers = #tpu.dot_dimension_numbers<[1], [1], [0], [0], [0, 0, 1, 0], [], []>} : vector<128x2xf32>, vector<256x2xf32>, vector<128x256xf32> -> vector<128x256xf32>
    %c0_3 = arith.constant 0 : index
    %c0_4 = arith.constant 0 : index
    %c0_5 = arith.constant 0 : index
    %9 = vector.load %arg7[%c0_3, %c0_4, %c0_5] : memref<1x128x256xf32, #tpu.memory_space<vmem>>, vector<1x128x256xf32>
    %10 = vector.shape_cast %9 : vector<1x128x256xf32> to vector<128x256xf32>
    %11 = vector.shape_cast %8 : vector<128x256xf32> to vector<1x128x256xf32>
    tpu.vector_store %arg7[%c0_3, %c0_4, %c0_5], %11 {strides = array<i32>} : memref<1x128x256xf32, #tpu.memory_space<vmem>>, vector<1x128x256xf32>,
    %cst_6 = arith.constant dense<0xFF800000> : vector<128xf32>
    %12 = vector.multi_reduction <maximumf>, %8, %cst_6 [1] : vector<128x256xf32> to vector<128xf32>
    %13 = vector.shape_cast %12 : vector<128xf32> to vector<128x1xf32>
    %14 = vector.broadcast %13 : vector<128x1xf32> to vector<128x256xf32>
    %15 = arith.subf %8, %14 : vector<128x256xf32>
    %16 = math.exp %15 : vector<128x256xf32>
    %cst_7 = arith.constant dense<0.000000e+00> : vector<128xf32>
    %17 = vector.multi_reduction <add>, %16, %cst_7 [1] : vector<128x256xf32> to vector<128xf32>
    %18 = vector.shape_cast %17 : vector<128xf32> to vector<128x1xf32>
    %19 = tpu.reciprocal %18 {approx = true} : vector<128x1xf32> -> vector<128x1xf32>
    %20 = vector.broadcast %19 : vector<128x1xf32> to vector<128x256xf32>
    %21 = arith.mulf %16, %20 : vector<128x256xf32>
    %c0_8 = arith.constant 0 : index
    %c0_9 = arith.constant 0 : index
    %22 = vector.load %arg8[%c0_8, %c0_9] : memref<256x128xf32, #tpu.memory_space<vmem>>, vector<256x128xf32>
    %cst_10 = arith.constant dense<0.000000e+00> : vector<128x128xf32>
    %23 = tpu.matmul %21, %22, %cst_10 {dimension_numbers = #tpu.dot_dimension_numbers<[1], [0], [0], [1], [0, 0, 1, 1], [], []>} : vector<128x256xf32>, vector<256x128xf32>, vector<128x128xf32> -> vector<128x128xf32>
    %c0_11 = arith.constant 0 : index
    %24 = arith.index_cast %4 : i32 to index
    %c0_12 = arith.constant 0 : index
    %25 = vector.load %arg2[%c0_11, %24, %c0_12] : memref<1x256x128xf32, #tpu.memory_space<vmem>>, vector<1x128x128xf32>
    %26 = vector.shape_cast %25 : vector<1x128x128xf32> to vector<128x128xf32>
    %c0_13 = arith.constant 0 : index
    %27 = memref.load %arg5[%c0_13] : memref<1xf32, #tpu.memory_space<smem>>
    %28 = vector.broadcast %27 : f32 to vector<128x128xf32>
    %29 = arith.mulf %28, %23 : vector<128x128xf32>
    %30 = arith.addf %29, %26 : vector<128x128xf32>
    %c0_14 = arith.constant 0 : index
    %c0_15 = arith.constant 0 : index
    %c0_16 = arith.constant 0 : index
    %31 = vector.load %arg6[%c0_14, %c0_15, %c0_16] : memref<1x128x128xf32, #tpu.memory_space<vmem>>, vector<1x128x128xf32>
    %32 = vector.shape_cast %31 : vector<1x128x128xf32> to vector<128x128xf32>
    %33 = vector.shape_cast %30 : vector<128x128xf32> to vector<1x128x128xf32>
    tpu.vector_store %arg6[%c0_14, %c0_15, %c0_16], %33 {strides = array<i32>} : memref<1x128x128xf32, #tpu.memory_space<vmem>>, vector<1x128x128xf32>,
    return
  }
  func.func @transform_0(%arg0: i32, %arg1: i32) -> (i32, i32, i32) {
    %c0_i32 = arith.constant 0 : i32
    %c0_i32_0 = arith.constant 0 : i32
    %c0_i32_1 = arith.constant 0 : i32
    return %arg0, %c0_i32, %c0_i32_0 : i32, i32, i32
  }
  func.func @transform_1(%arg0: i32, %arg1: i32) -> (i32, i32) {
    %c0_i32 = arith.constant 0 : i32
    %c0_i32_0 = arith.constant 0 : i32
    %c0_i32_1 = arith.constant 0 : i32
    return %c0_i32, %c0_i32_0 : i32, i32
  }
  func.func @transform_2(%arg0: i32, %arg1: i32) -> (i32, i32) {
    %c0_i32 = arith.constant 0 : i32
    %c0_i32_0 = arith.constant 0 : i32
    %c0_i32_1 = arith.constant 0 : i32
    return %c0_i32, %c0_i32_0 : i32, i32
  }
  func.func @transform_3(%arg0: i32, %arg1: i32) -> i32 {
    %c0_i32 = arith.constant 0 : i32
    %c0_i32_0 = arith.constant 0 : i32
    return %c0_i32 : i32
  }
  func.func @transform_4(%arg0: i32, %arg1: i32) -> (i32, i32, i32) {
    %c0_i32 = arith.constant 0 : i32
    %c0_i32_0 = arith.constant 0 : i32
    return %arg0, %arg1, %c0_i32 : i32, i32, i32
  }
  func.func @transform_5(%arg0: i32, %arg1: i32) -> (i32, i32, i32) {
    %c0_i32 = arith.constant 0 : i32
    %c0_i32_0 = arith.constant 0 : i32
    return %arg0, %arg1, %c0_i32 : i32, i32, i32
  }
}

</mosaic_0001>

<llo_original>
// kernel: tpu_custom_call.1
$region0: #{tpu_custom_call.1}
  #allocation0 [shape = 'u32[]', space=smem, size = 0x4, offset = 0x4, fixed_abs, tag = 'smem constant byte address 0x4 - core index']
  #allocation1 [shape = 'u32[144,128]{1,0:T(1,128)}', space=vmem, size = 0x12000, scoped, tag = 'internal scratch']
  #allocation2 [shape = 'f32[256,128]{1,0:T(8,128)}', space=vmem, size = 0x20000, scoped, tag = 'scratch operand']
  #allocation3 [shape = 'f32[256,2]{1,0:T(8,128)}', space=vmem, size = 0x20000, scoped, tag = 'scratch operand']
  #allocation4 [shape = 'f32[256,2]{1,0:T(8,128)}', space=vmem, size = 0x20000, scoped, tag = 'scratch operand']
  #allocation5 [shape = 'f32[1]{0:T(128)S(6)}', space=smem, size = 0x200, scoped, tag = 'scoped memory for tpu_custom_call.1']
  %s0 = inlined_call_operand.hbm [shape: f32[2,256,128], index: 0, kind: input, shape index: {}]
  %s1 = inlined_call_operand.vmem [shape: f32[128,132], index: 1, kind: input, shape index: {}]
  %s2 = inlined_call_operand.vmem [shape: f32[1,132], index: 2, kind: input, shape index: {}]
  %s3 = inlined_call_operand.<no memory space> [shape: f32[1], index: 3, kind: input, shape index: {}]
  %s4 = inlined_call_operand.hbm [shape: f32[2,256,128], index: 4, kind: output, shape index: {0}]
  %s5 = inlined_call_operand.hbm [shape: f32[2,256,256], index: 5, kind: output, shape index: {1}]
  %6 = xla_tuple %s4, %s5
  %s7 = sld [smem:[#allocation0]]
  $region65: #{tpu_custom_call.1} parent=0
    _
  %s9 = ssub.s32 1, %s7
  %s10 = scalar_select 0, %s9, %s7
  %11 = sst [smem:[#allocation5]] %s3
  $region1: #{tpu_custom_call.1} parent=0
    #allocation6 [shape = 'u8[262144]{0}', space=vmem, size = 0x40000, scoped, tag = 'input window, operand 0']
    #allocation7 [shape = 's32[2]{0}', space=sflag, size = 0x8, scoped, tag = 'scoped memory for tpu_custom_call.1']
    #allocation8 [shape = 's32[2]{0}', space=sflag, size = 0x8, scoped, tag = 'scoped memory for tpu_custom_call.1']
    #allocation9 [shape = 'u8[131072]{0}', space=vmem, size = 0x20000, scoped, tag = 'output window, operand 0']
    #allocation10 [shape = 'u8[262144]{0}', space=vmem, size = 0x40000, scoped, tag = 'output window, operand 1']
    #allocation11 [shape = 's32[2]{0}', space=sflag, size = 0x8, scoped, tag = 'scoped memory for tpu_custom_call.1']
    %12 = vsyncpa [#allocation7], 0
    %s13 = scalar_lea.sflag [#allocation7], 1
    %14 = vsyncpa %s13, 0
    %15 = vsyncpa [#allocation8], 0
    %s16 = scalar_lea.sflag [#allocation8], 1
    %17 = vsyncpa %s16, 0
    %18 = vsyncpa [#allocation11], 0
    %s19 = scalar_lea.sflag [#allocation11], 1
    %20 = vsyncpa %s19, 0
    loop: start=0, step=1, limit=6
    $region2: #{tpu_custom_call.1} parent=1 // loop_pre_header
      _
    $region3: #{tpu_custom_call.1} parent=1 // loop_header
      %s22 = sphi 0, %s26
      %p23 = scmp.ge.s32.totalorder %s22, 6
      %s29 = sphi 0, %s41
      %s30 = sphi 0, %s37
      %s31 = sphi 0, %s29
      %s32 = sphi 0, %s30
      %s33 = sphi 0, %s31
      %s34 = sphi 0, %s32
      %s44 = sphi 0, %s46
      %s47 = sphi 0, %s44
      %s48 = sphi 0, %s47
      %s64 = sphi 0, %s48
      %s68 = sphi 0, %s68
      %s70 = sphi 0, %s68
      %s71 = sphi 0, %s70
      %s85 = sphi 0, %s71
      %s89 = sphi 0, %s89
      %s91 = sphi 0, %s89
      %s92 = sphi 0, %s91
      %s106 = sphi 0, %s92
      %s110 = sphi 0, %s110
      %s112 = sphi 0, %s110
      %s113 = sphi 0, %s112
      %s127 = sphi 0, %s113
      %s135 = sphi 0, %s137
      %s138 = sphi 0, %s135
      %s139 = sphi 0, %s138
      %s155 = sphi 0, %s139
      %s163 = sphi 0, %s165
      %s166 = sphi 0, %s163
      %s167 = sphi 0, %s166
      %s183 = sphi 0, %s167
    $region4: #{tpu_custom_call.1} parent=1 // loop_header_branch
      %25 = sbr.rel (%p23) target = $region8
    $region5: #{tpu_custom_call.1} parent=1 // loop_body
      %s27 = ssub.s32 %s22, 1
      %s28 = ssub.s32 %s22, 2
      %s35 = sadd.s32 1, %s30
      %p36 = scmp.ge.s32.totalorder %s35, 2
      %s37 = scalar_select %p36, 0, %s35
      %s38 = sadd.s32 1, %s29
      %s39 = scalar_select %p36, %s38, %s29
      %p40 = scmp.ge.s32.totalorder %s39, 2
      %s41 = scalar_select %p40, 0, %s39
      %s42 = ssub.s32 %s29, %s41
      %p43 = scmp.eq.s32.totalorder %s42, 0
      %s45 = sadd.s32 %s44, 1
      %s46 = scalar_select %p43, %s44, %s45
      %p49 = pneg %p43
      %p50 = scmp.eq.s32.totalorder %s22, 3
      %p51 = por %p49, %p50
      %p52 = scmp.ne.s32.totalorder %s44, %s47
      %p53 = scmp.eq.s32.totalorder %s22, 0
      %p54 = por %p52, %p53
      %p55 = scmp.ne.s32.totalorder %s44, %s47
      %p56 = scmp.eq.s32.totalorder %s27, 3
      %p57 = por %p55, %p56
      %p58 = scmp.ne.s32.totalorder %s47, %s48
      %p59 = scmp.eq.s32.totalorder %s27, 0
      %p60 = por %p58, %p59
      %p61 = scmp.ne.s32.totalorder %s47, %s48
      %p62 = scmp.eq.s32.totalorder %s28, 3
      %p63 = por %p61, %p62
      %p65 = scmp.ne.s32.totalorder %s48, %s64
      %p66 = scmp.eq.s32.totalorder %s28, 0
      %p67 = por %p65, %p66
      %s69 = sadd.s32 %s68, 1
      %p72 = scmp.eq.s32.totalorder %s22, 3
      %p73 = scmp.ne.s32.totalorder %s68, %s70
      %p74 = scmp.eq.s32.totalorder %s22, 0
      %p75 = por %p73, %p74
      %p76 = scmp.ne.s32.totalorder %s68, %s70
      %p77 = scmp.eq.s32.totalorder %s27, 3
      %p78 = por %p76, %p77
      %p79 = scmp.ne.s32.totalorder %s70, %s71
      %p80 = scmp.eq.s32.totalorder %s27, 0
      %p81 = por %p79, %p80
      %p82 = scmp.ne.s32.totalorder %s70, %s71
      %p83 = scmp.eq.s32.totalorder %s28, 3
      %p84 = por %p82, %p83
      %p86 = scmp.ne.s32.totalorder %s71, %s85
      %p87 = scmp.eq.s32.totalorder %s28, 0
      %p88 = por %p86, %p87
      %s90 = sadd.s32 %s89, 1
      %p93 = scmp.eq.s32.totalorder %s22, 3
      %p94 = scmp.ne.s32.totalorder %s89, %s91
      %p95 = scmp.eq.s32.totalorder %s22, 0
      %p96 = por %p94, %p95
      %p97 = scmp.ne.s32.totalorder %s89, %s91
      %p98 = scmp.eq.s32.totalorder %s27, 3
      %p99 = por %p97, %p98
      %p100 = scmp.ne.s32.totalorder %s91, %s92
      %p101 = scmp.eq.s32.totalorder %s27, 0
      %p102 = por %p100, %p101
      %p103 = scmp.ne.s32.totalorder %s91, %s92
      %p104 = scmp.eq.s32.totalorder %s28, 3
      %p105 = por %p103, %p104
      %p107 = scmp.ne.s32.totalorder %s92, %s106
      %p108 = scmp.eq.s32.totalorder %s28, 0
      %p109 = por %p107, %p108
      %s111 = sadd.s32 %s110, 1
      %p114 = scmp.eq.s32.totalorder %s22, 3
      %p115 = scmp.ne.s32.totalorder %s110, %s112
      %p116 = scmp.eq.s32.totalorder %s22, 0
      %p117 = por %p115, %p116
      %p118 = scmp.ne.s32.totalorder %s110, %s112
      %p119 = scmp.eq.s32.totalorder %s27, 3
      %p120 = por %p118, %p119
      %p121 = scmp.ne.s32.totalorder %s112, %s113
      %p122 = scmp.eq.s32.totalorder %s27, 0
      %p123 = por %p121, %p122
      %p124 = scmp.ne.s32.totalorder %s112, %s113
      %p125 = scmp.eq.s32.totalorder %s28, 3
      %p126 = por %p124, %p125
      %p128 = scmp.ne.s32.totalorder %s113, %s127
      %p129 = scmp.eq.s32.totalorder %s28, 0
      %p130 = por %p128, %p129
      %s131 = ssub.s32 %s29, %s41
      %s132 = ssub.s32 %s30, %s37
      %s133 = sor.u32 %s131, %s132
      %p134 = scmp.eq.s32.totalorder %s133, 0
      %s136 = sadd.s32 %s135, 1
      %s137 = scalar_select %p134, %s135, %s136
      %p140 = pneg %p134
      %p141 = scmp.eq.s32.totalorder %s22, 3
      %p142 = por %p140, %p141
      %p143 = scmp.ne.s32.totalorder %s135, %s138
      %p144 = scmp.eq.s32.totalorder %s22, 0
      %p145 = por %p143, %p144
      %p146 = scmp.ne.s32.totalorder %s135, %s138
      %p147 = scmp.eq.s32.totalorder %s27, 3
      %p148 = por %p146, %p147
      %p149 = scmp.ne.s32.totalorder %s138, %s139
      %p150 = scmp.eq.s32.totalorder %s27, 0
      %p151 = por %p149, %p150
      %p152 = scmp.ne.s32.totalorder %s138, %s139
      %p153 = scmp.eq.s32.totalorder %s28, 3
      %p154 = por %p152, %p153
      %p156 = scmp.ne.s32.totalorder %s139, %s155
      %p157 = scmp.eq.s32.totalorder %s28, 0
      %p158 = por %p156, %p157
      %s159 = ssub.s32 %s29, %s41
      %s160 = ssub.s32 %s30, %s37
      %s161 = sor.u32 %s159, %s160
      %p162 = scmp.eq.s32.totalorder %s161, 0
      %s164 = sadd.s32 %s163, 1
      %s165 = scalar_select %p162, %s163, %s164
      %p168 = pneg %p162
      %p169 = scmp.eq.s32.totalorder %s22, 3
      %p170 = por %p168, %p169
      %p171 = scmp.ne.s32.totalorder %s163, %s166
      %p172 = scmp.eq.s32.totalorder %s22, 0
      %p173 = por %p171, %p172
      %p174 = scmp.ne.s32.totalorder %s163, %s166
      %p175 = scmp.eq.s32.totalorder %s27, 3
      %p176 = por %p174, %p175
      %p177 = scmp.ne.s32.totalorder %s166, %s167
      %p178 = scmp.eq.s32.totalorder %s27, 0
      %p179 = por %p177, %p178
      %p180 = scmp.ne.s32.totalorder %s166, %s167
      %p181 = scmp.eq.s32.totalorder %s28, 3
      %p182 = por %p180, %p181
      %p184 = scmp.ne.s32.totalorder %s167, %s183
      %p185 = scmp.eq.s32.totalorder %s28, 0
      %p186 = por %p184, %p185
      %p187 = scmp.le.s32.totalorder 1, %s22
      %p188 = scmp.lt.s32.totalorder %s22, 5
      %p189 = pnand %p187, %p188
      %p190 = pneg %p189
      // Predicated region
      $region9: #{tpu_custom_call.1} parent=5 // pred_check
        _
      $region10: #{tpu_custom_call.1} parent=5 // pred_check_branch
        %192 = sbr.rel (%p189) target = $region12
      $region11: #{tpu_custom_call.1} parent=5 // pred_region
        %s193 = ssub.s32 %s22, 1
        // Predicated region
        $region13: #{tpu_custom_call.1} parent=11 // pred_check
          %p194 = pneg %p81
        $region14: #{tpu_custom_call.1} parent=11 // pred_check_branch
          %196 = sbr.rel (%p194) target = $region16
        $region15: #{tpu_custom_call.1} parent=11 // pred_region
          _
        $region16: #{tpu_custom_call.1} parent=11 // pred_fallthru
          _
        // Predicated region
        $region17: #{tpu_custom_call.1} parent=11 // pred_check
          %p197 = pneg %p102
        $region18: #{tpu_custom_call.1} parent=11 // pred_check_branch
          %199 = sbr.rel (%p197) target = $region20
        $region19: #{tpu_custom_call.1} parent=11 // pred_region
          _
        $region20: #{tpu_custom_call.1} parent=11 // pred_fallthru
          _
        // Predicated region
        $region21: #{tpu_custom_call.1} parent=11 // pred_check
          %p200 = pneg %p123
        $region22: #{tpu_custom_call.1} parent=11 // pred_check_branch
          %202 = sbr.rel (%p200) target = $region24
        $region23: #{tpu_custom_call.1} parent=11 // pred_region
          _
        $region24: #{tpu_custom_call.1} parent=11 // pred_fallthru
          _
      $region12: #{tpu_custom_call.1} parent=5 // pred_fallthru
        _
      %p203 = scmp.lt.s32.totalorder %s22, 4
      // Predicated region
      $region25: #{tpu_custom_call.1} parent=5 // pred_check
        %p204 = pneg %p203
      $region26: #{tpu_custom_call.1} parent=5 // pred_check_branch
        %206 = sbr.rel (%p204) target = $region28
      $region27: #{tpu_custom_call.1} parent=5 // pred_region
        // Predicated region
        $region29: #{tpu_custom_call.1} parent=27 // pred_check
          %p207 = pneg %p54
        $region30: #{tpu_custom_call.1} parent=27 // pred_check_branch
          %209 = sbr.rel (%p207) target = $region32
        $region31: #{tpu_custom_call.1} parent=27 // pred_region
          %s210 = sand.u32 %s44, 1
          %s211 = scalar_lea.sflag [#allocation7], %s210
          %s212 = sand.u32 %s44, 1
          %s213 = smul.addr %s212, 256
          %s214 = scalar_lea.vmem [#allocation6], %s213
          %s216 = ssub.s32 4096, 4096
          %217 = vsyncadd %s211, %s216
          %s218 = smul.addr %s29, 32
          %s219 = smul.addr %s218, 128
          %s220 = scalar_lea.hbm %s0, %s219
          %s221 = sshll.u32 %s214, 4
          %s222 = int_to_ptr.vmem [resolvable:$true] %s221
          %227 = dma.hbm_to_vmem [thread:$0]  %s220, 4096, %s222, %s211, 128, 128, 8
        $region32: #{tpu_custom_call.1} parent=27 // pred_fallthru
          _
      $region28: #{tpu_custom_call.1} parent=5 // pred_fallthru
        _
      %p228 = scmp.le.s32.totalorder 1, %s22
      %p229 = scmp.lt.s32.totalorder %s22, 5
      %p230 = pnand %p228, %p229
      %p231 = pneg %p230
      // Predicated region
      $region33: #{tpu_custom_call.1} parent=5 // pred_check
        _
      $region34: #{tpu_custom_call.1} parent=5 // pred_check_branch
        %233 = sbr.rel (%p230) target = $region36
      $region35: #{tpu_custom_call.1} parent=5 // pred_region
        %s234 = ssub.s32 %s22, 1
        %s235 = sand.u32 %s47, 1
        %s236 = scalar_lea.sflag [#allocation7], %s235
        %s237 = sand.u32 %s47, 1
        %s238 = smul.addr %s237, 256
        %s239 = scalar_lea.vmem [#allocation6], %s238
        // Predicated region
        $region37: #{tpu_custom_call.1} parent=35 // pred_check
          %p240 = pneg %p60
        $region38: #{tpu_custom_call.1} parent=35 // pred_check_branch
          %242 = sbr.rel (%p240) target = $region40
        $region39: #{tpu_custom_call.1} parent=35 // pred_region
          %243 = dma.done %s236, 4096
        $region40: #{tpu_custom_call.1} parent=35 // pred_fallthru
          _
        %s244 = sand.u32 %s47, 1
        %s245 = scalar_lea.sflag [#allocation7], %s244
        %s246 = sand.u32 %s47, 1
        %s247 = smul.addr %s246, 256
        %s248 = scalar_lea.vmem [#allocation6], %s247
        %p249 = pneg %p60
        %p250 = pneg %p57
        %p251 = pneg %p81
        %p252 = pneg %p78
        %p253 = pneg %p102
        %p254 = pneg %p99
        %p255 = pneg %p123
        %p256 = pneg %p120
        %p257 = pneg %p151
        %p258 = pneg %p148
        %s259 = sand.u32 %s138, 1
        %s260 = scalar_lea.sflag [#allocation8], %s259
        %s261 = sand.u32 %s138, 1
        %s262 = smul.addr %s261, 128
        %s263 = scalar_lea.vmem [#allocation9], %s262
        %p264 = pneg %p179
        %p265 = pneg %p176
        %s266 = sand.u32 %s166, 1
        %s267 = scalar_lea.sflag [#allocation11], %s266
        %s268 = sand.u32 %s166, 1
        %s269 = smul.addr %s268, 256
        %s270 = scalar_lea.vmem [#allocation10], %s269
        %s271 = smul.u32 16, %s32
        %s272 = smul.u32 16, %s32
        %p273 = scmp.eq.s32.totalorder %s32, 0
        // Predicated region
        $region41: #{tpu_custom_call.1} parent=35 // pred_check
          %p274 = pneg %p273
        $region42: #{tpu_custom_call.1} parent=35 // pred_check_branch
          %276 = sbr.rel (%p274) target = $region44
        $region43: #{tpu_custom_call.1} parent=35 // pred_region
          %v277 = vld [vmem:[%s239] sm:$0xff]
          %v278 = vld [vmem:[%s239 + $0x8] sm:$0xff]
          %v279 = vld [vmem:[%s239 + $0x10] sm:$0xff]
          %v280 = vld [vmem:[%s239 + $0x18] sm:$0xff]
          %v281 = vld [vmem:[%s239 + $0x20] sm:$0xff]
          %v282 = vld [vmem:[%s239 + $0x28] sm:$0xff]
          %v283 = vld [vmem:[%s239 + $0x30] sm:$0xff]
          %v284 = vld [vmem:[%s239 + $0x38] sm:$0xff]
          %v285 = vld [vmem:[%s239 + $0x40] sm:$0xff]
          %v286 = vld [vmem:[%s239 + $0x48] sm:$0xff]
          %v287 = vld [vmem:[%s239 + $0x50] sm:$0xff]
          %v288 = vld [vmem:[%s239 + $0x58] sm:$0xff]
          %v289 = vld [vmem:[%s239 + $0x60] sm:$0xff]
          %v290 = vld [vmem:[%s239 + $0x68] sm:$0xff]
          %v291 = vld [vmem:[%s239 + $0x70] sm:$0xff]
          %v292 = vld [vmem:[%s239 + $0x78] sm:$0xff]
          %v293 = vld [vmem:[%s239 + $0x80] sm:$0xff]
          %v294 = vld [vmem:[%s239 + $0x88] sm:$0xff]
          %v295 = vld [vmem:[%s239 + $0x90] sm:$0xff]
          %v296 = vld [vmem:[%s239 + $0x98] sm:$0xff]
          %v297 = vld [vmem:[%s239 + $0xa0] sm:$0xff]
          %v298 = vld [vmem:[%s239 + $0xa8] sm:$0xff]
          %v299 = vld [vmem:[%s239 + $0xb0] sm:$0xff]
          %v300 = vld [vmem:[%s239 + $0xb8] sm:$0xff]
          %v301 = vld [vmem:[%s239 + $0xc0] sm:$0xff]
          %v302 = vld [vmem:[%s239 + $0xc8] sm:$0xff]
          %v303 = vld [vmem:[%s239 + $0xd0] sm:$0xff]
          %v304 = vld [vmem:[%s239 + $0xd8] sm:$0xff]
          %v305 = vld [vmem:[%s239 + $0xe0] sm:$0xff]
          %v306 = vld [vmem:[%s239 + $0xe8] sm:$0xff]
          %v307 = vld [vmem:[%s239 + $0xf0] sm:$0xff]
          %v308 = vld [vmem:[%s239 + $0xf8] sm:$0xff]
          %v309 = vld [vmem:[%s1] sm:$0xff]
          %v310 = vld [vmem:[%s1 + $0x8] sm:$0xff]
          %v311 = vld [vmem:[%s1 + $0x10] sm:$0xff]
          %v312 = vld [vmem:[%s1 + $0x18] sm:$0xff]
          %v313 = vld [vmem:[%s1 + $0x20] sm:$0xff]
          %v314 = vld [vmem:[%s1 + $0x28] sm:$0xff]
          %v315 = vld [vmem:[%s1 + $0x30] sm:$0xff]
          %v316 = vld [vmem:[%s1 + $0x38] sm:$0xff]
          %v317 = vld [vmem:[%s1 + $0x40] sm:$0xff]
          %v318 = vld [vmem:[%s1 + $0x48] sm:$0xff]
          %v319 = vld [vmem:[%s1 + $0x50] sm:$0xff]
          %v320 = vld [vmem:[%s1 + $0x58] sm:$0xff]
          %v321 = vld [vmem:[%s1 + $0x60] sm:$0xff]
          %v322 = vld [vmem:[%s1 + $0x68] sm:$0xff]
          %v323 = vld [vmem:[%s1 + $0x70] sm:$0xff]
          %v324 = vld [vmem:[%s1 + $0x78] sm:$0xff]
          %v325 = vld [vmem:[%s1 + $0x80] sm:$0xff]
          %v326 = vld [vmem:[%s1 + $0x88] sm:$0xff]
          %v327 = vld [vmem:[%s1 + $0x90] sm:$0xff]
          %v328 = vld [vmem:[%s1 + $0x98] sm:$0xff]
          %v329 = vld [vmem:[%s1 + $0xa0] sm:$0xff]
          %v330 = vld [vmem:[%s1 + $0xa8] sm:$0xff]
          %v331 = vld [vmem:[%s1 + $0xb0] sm:$0xff]
          %v332 = vld [vmem:[%s1 + $0xb8] sm:$0xff]
          %v333 = vld [vmem:[%s1 + $0xc0] sm:$0xff]
          %v334 = vld [vmem:[%s1 + $0xc8] sm:$0xff]
          %v335 = vld [vmem:[%s1 + $0xd0] sm:$0xff]
          %v336 = vld [vmem:[%s1 + $0xd8] sm:$0xff]
          %v337 = vld [vmem:[%s1 + $0xe0] sm:$0xff]
          %v338 = vld [vmem:[%s1 + $0xe8] sm:$0xff]
          %v339 = vld [vmem:[%s1 + $0xf0] sm:$0xff]
          %v340 = vld [vmem:[%s1 + $0xf8] sm:$0xff]
          %v341 = vld [vmem:[%s2] sm:$0x3]
          %v343 = vlaneseq
          %v344 = vshrl.u32 %v343, 7
          %v345 = vsub.s32 0, %v344
          %v346 = vrot.slane %v341, %v345
          %v347 = vlaneseq
          %v348 = vshrl.u32 %v347, 7
          %v349 = vsub.s32 1, %v348
          %v350 = vrot.slane %v341, %v349
          %353 = vmatprep.subr.mxu0 %v310
          %354 = vmatpush1.msra.mxu0 %v309
          %355 = vmatprep.subr.mxu0 %v312
          %356 = vmatpush1.msra.mxu0 %v311
          %357 = vmatprep.subr.mxu0 %v314
          %358 = vmatpush1.msra.mxu0 %v313
          %359 = vmatprep.subr.mxu0 %v316
          %360 = vmatpush1.msra.mxu0 %v315
          %361 = vmatprep.subr.mxu0 %v318
          %362 = vmatpush1.msra.mxu0 %v317
          %363 = vmatprep.subr.mxu0 %v320
          %364 = vmatpush1.msra.mxu0 %v319
          %365 = vmatprep.subr.mxu0 %v322
          %366 = vmatpush1.msra.mxu0 %v321
          %367 = vmatprep.subr.mxu0 %v324
          %368 = vmatpush1.msra.mxu0 %v323
          %369 = vmatprep.subr.mxu0 %v326
          %370 = vmatpush1.msra.mxu0 %v325
          %371 = vmatprep.subr.mxu0 %v328
          %372 = vmatpush1.msra.mxu0 %v327
          %373 = vmatprep.subr.mxu0 %v330
          %374 = vmatpush1.msra.mxu0 %v329
          %375 = vmatprep.subr.mxu0 %v332
          %376 = vmatpush1.msra.mxu0 %v331
          %377 = vmatprep.subr.mxu0 %v334
          %378 = vmatpush1.msra.mxu0 %v333
          %379 = vmatprep.subr.mxu0 %v336
          %380 = vmatpush1.msra.mxu0 %v335
          %381 = vmatprep.subr.mxu0 %v338
          %382 = vmatpush1.msra.mxu0 %v337
          %383 = vmatprep.subr.mxu0 %v340
          %384 = vmatpush1.msra.mxu0 %v339
          %385 = vmatprep.subr.mxu0 0.0
          %386 = vmatpush1.msra.mxu0 0.0
          %387 = vmatprep.subr.mxu0 0.0
          %388 = vmatpush1.msra.mxu0 0.0
          %389 = vmatprep.subr.mxu0 0.0
          %390 = vmatpush1.msra.mxu0 0.0
          %391 = vmatprep.subr.mxu0 0.0
          %392 = vmatpush1.msra.mxu0 0.0
          %393 = vmatprep.subr.mxu0 0.0
          %394 = vmatpush1.msra.mxu0 0.0
          %395 = vmatprep.subr.mxu0 0.0
          %396 = vmatpush1.msra.mxu0 0.0
          %397 = vmatprep.subr.mxu0 0.0
          %398 = vmatpush1.msra.mxu0 0.0
          %399 = vmatprep.subr.mxu0 0.0
          %400 = vmatpush1.msra.mxu0 0.0
          %401 = vmatprep.subr.mxu0 0.0
          %402 = vmatpush1.msra.mxu0 0.0
          %403 = vmatprep.subr.mxu0 0.0
          %404 = vmatpush1.msra.mxu0 0.0
          %405 = vmatprep.subr.mxu0 0.0
          %406 = vmatpush1.msra.mxu0 0.0
          %407 = vmatprep.subr.mxu0 0.0
          %408 = vmatpush1.msra.mxu0 0.0
          %409 = vmatprep.subr.mxu0 0.0
          %410 = vmatpush1.msra.mxu0 0.0
          %411 = vmatprep.subr.mxu0 0.0
          %412 = vmatpush1.msra.mxu0 0.0
          %413 = vmatprep.subr.mxu0 0.0
          %414 = vmatpush1.msra.mxu0 0.0
          %415 = vmatprep.subr.mxu0 0.0
          %416 = vmatpush1.msra.mxu0 0.0
          %417 = vmatprep.mubr.f32.mxu0 0.0
          %418 = vmatmul.mubr.f32.gmra.mrb[0].mxu0 %v277
          %v419 = vpop.f32.mrb[0].mxu0
          %v420 = vadd.f32 %v346, %v419
          %v421 = vpop.f32.mrb[0].mxu0
          %v422 = vadd.f32 %v350, %v421
          %423 = vmatprep.mubr.f32.mxu0 0.0
          %424 = vmatmul.mubr.f32.gmra.mrb[0].mxu0 %v278
          %v425 = vpop.f32.mrb[0].mxu0
          %v426 = vadd.f32 %v346, %v425
          %v427 = vpop.f32.mrb[0].mxu0
          %v428 = vadd.f32 %v350, %v427
          %429 = vmatprep.mubr.f32.mxu0 0.0
          %430 = vmatmul.mubr.f32.gmra.mrb[0].mxu0 %v279
          %v431 = vpop.f32.mrb[0].mxu0
          %v432 = vadd.f32 %v346, %v431
          %v433 = vpop.f32.mrb[0].mxu0
          %v434 = vadd.f32 %v350, %v433
          %435 = vmatprep.mubr.f32.mxu0 0.0
          %436 = vmatmul.mubr.f32.gmra.mrb[0].mxu0 %v280
          %v437 = vpop.f32.mrb[0].mxu0
          %v438 = vadd.f32 %v346, %v437
          %v439 = vpop.f32.mrb[0].mxu0
          %v440 = vadd.f32 %v350, %v439
          %441 = vmatprep.mubr.f32.mxu0 0.0
          %442 = vmatmul.mubr.f32.gmra.mrb[0].mxu0 %v281
          %v443 = vpop.f32.mrb[0].mxu0
          %v444 = vadd.f32 %v346, %v443
          %v445 = vpop.f32.mrb[0].mxu0
          %v446 = vadd.f32 %v350, %v445
          %447 = vmatprep.mubr.f32.mxu0 0.0
          %448 = vmatmul.mubr.f32.gmra.mrb[0].mxu0 %v282
          %v449 = vpop.f32.mrb[0].mxu0
          %v450 = vadd.f32 %v346, %v449
          %v451 = vpop.f32.mrb[0].mxu0
          %v452 = vadd.f32 %v350, %v451
          %453 = vmatprep.mubr.f32.mxu0 0.0
          %454 = vmatmul.mubr.f32.gmra.mrb[0].mxu0 %v283
          %v455 = vpop.f32.mrb[0].mxu0
          %v456 = vadd.f32 %v346, %v455
          %v457 = vpop.f32.mrb[0].mxu0
          %v458 = vadd.f32 %v350, %v457
          %459 = vmatprep.mubr.f32.mxu0 0.0
          %460 = vmatmul.mubr.f32.gmra.mrb[0].mxu0 %v284
          %v461 = vpop.f32.mrb[0].mxu0
          %v462 = vadd.f32 %v346, %v461
          %v463 = vpop.f32.mrb[0].mxu0
          %v464 = vadd.f32 %v350, %v463
          %465 = vmatprep.mubr.f32.mxu0 0.0
          %466 = vmatmul.mubr.f32.gmra.mrb[0].mxu0 %v285
          %v467 = vpop.f32.mrb[0].mxu0
          %v468 = vadd.f32 %v346, %v467
          %v469 = vpop.f32.mrb[0].mxu0
          %v470 = vadd.f32 %v350, %v469
          %471 = vmatprep.mubr.f32.mxu0 0.0
          %472 = vmatmul.mubr.f32.gmra.mrb[0].mxu0 %v286
          %v473 = vpop.f32.mrb[0].mxu0
          %v474 = vadd.f32 %v346, %v473
          %v475 = vpop.f32.mrb[0].mxu0
          %v476 = vadd.f32 %v350, %v475
          %477 = vmatprep.mubr.f32.mxu0 0.0
          %478 = vmatmul.mubr.f32.gmra.mrb[0].mxu0 %v287
          %v479 = vpop.f32.mrb[0].mxu0
          %v480 = vadd.f32 %v346, %v479
          %v481 = vpop.f32.mrb[0].mxu0
          %v482 = vadd.f32 %v350, %v481
          %483 = vmatprep.mubr.f32.mxu0 0.0
          %484 = vmatmul.mubr.f32.gmra.mrb[0].mxu0 %v288
          %v485 = vpop.f32.mrb[0].mxu0
          %v486 = vadd.f32 %v346, %v485
          %v487 = vpop.f32.mrb[0].mxu0
          %v488 = vadd.f32 %v350, %v487
          %489 = vmatprep.mubr.f32.mxu0 0.0
          %490 = vmatmul.mubr.f32.gmra.mrb[0].mxu0 %v289
          %v491 = vpop.f32.mrb[0].mxu0
          %v492 = vadd.f32 %v346, %v491
          %v493 = vpop.f32.mrb[0].mxu0
          %v494 = vadd.f32 %v350, %v493
          %495 = vmatprep.mubr.f32.mxu0 0.0
          %496 = vmatmul.mubr.f32.gmra.mrb[0].mxu0 %v290
          %v497 = vpop.f32.mrb[0].mxu0
          %v498 = vadd.f32 %v346, %v497
          %v499 = vpop.f32.mrb[0].mxu0
          %v500 = vadd.f32 %v350, %v499
          %501 = vmatprep.mubr.f32.mxu0 0.0
          %502 = vmatmul.mubr.f32.gmra.mrb[0].mxu0 %v291
          %v503 = vpop.f32.mrb[0].mxu0
          %v504 = vadd.f32 %v346, %v503
          %v505 = vpop.f32.mrb[0].mxu0
          %v506 = vadd.f32 %v350, %v505
          %507 = vmatprep.mubr.f32.mxu0 0.0
          %508 = vmatmul.mubr.f32.gmra.mrb[0].mxu0 %v292
          %v509 = vpop.f32.mrb[0].mxu0
          %v510 = vadd.f32 %v346, %v509
          %v511 = vpop.f32.mrb[0].mxu0
          %v512 = vadd.f32 %v350, %v511
          %513 = vmatprep.mubr.f32.mxu0 0.0
          %514 = vmatmul.mubr.f32.gmra.mrb[0].mxu0 %v293
          %v515 = vpop.f32.mrb[0].mxu0
          %v516 = vadd.f32 %v346, %v515
          %v517 = vpop.f32.mrb[0].mxu0
          %v518 = vadd.f32 %v350, %v517
          %519 = vmatprep.mubr.f32.mxu0 0.0
          %520 = vmatmul.mubr.f32.gmra.mrb[0].mxu0 %v294
          %v521 = vpop.f32.mrb[0].mxu0
          %v522 = vadd.f32 %v346, %v521
          %v523 = vpop.f32.mrb[0].mxu0
          %v524 = vadd.f32 %v350, %v523
          %525 = vmatprep.mubr.f32.mxu0 0.0
          %526 = vmatmul.mubr.f32.gmra.mrb[0].mxu0 %v295
          %v527 = vpop.f32.mrb[0].mxu0
          %v528 = vadd.f32 %v346, %v527
          %v529 = vpop.f32.mrb[0].mxu0
          %v530 = vadd.f32 %v350, %v529
          %531 = vmatprep.mubr.f32.mxu0 0.0
          %532 = vmatmul.mubr.f32.gmra.mrb[0].mxu0 %v296
          %v533 = vpop.f32.mrb[0].mxu0
          %v534 = vadd.f32 %v346, %v533
          %v535 = vpop.f32.mrb[0].mxu0
          %v536 = vadd.f32 %v350, %v535
          %537 = vmatprep.mubr.f32.mxu0 0.0
          %538 = vmatmul.mubr.f32.gmra.mrb[0].mxu0 %v297
          %v539 = vpop.f32.mrb[0].mxu0
          %v540 = vadd.f32 %v346, %v539
          %v541 = vpop.f32.mrb[0].mxu0
          %v542 = vadd.f32 %v350, %v541
          %543 = vmatprep.mubr.f32.mxu0 0.0
          %544 = vmatmul.mubr.f32.gmra.mrb[0].mxu0 %v298
          %v545 = vpop.f32.mrb[0].mxu0
          %v546 = vadd.f32 %v346, %v545
          %v547 = vpop.f32.mrb[0].mxu0
          %v548 = vadd.f32 %v350, %v547
          %549 = vmatprep.mubr.f32.mxu0 0.0
          %550 = vmatmul.mubr.f32.gmra.mrb[0].mxu0 %v299
          %v551 = vpop.f32.mrb[0].mxu0
          %v552 = vadd.f32 %v346, %v551
          %v553 = vpop.f32.mrb[0].mxu0
          %v554 = vadd.f32 %v350, %v553
          %555 = vmatprep.mubr.f32.mxu0 0.0
          %556 = vmatmul.mubr.f32.gmra.mrb[0].mxu0 %v300
          %v557 = vpop.f32.mrb[0].mxu0
          %v558 = vadd.f32 %v346, %v557
          %v559 = vpop.f32.mrb[0].mxu0
          %v560 = vadd.f32 %v350, %v559
          %561 = vmatprep.mubr.f32.mxu0 0.0
          %562 = vmatmul.mubr.f32.gmra.mrb[0].mxu0 %v301
          %v563 = vpop.f32.mrb[0].mxu0
          %v564 = vadd.f32 %v346, %v563
          %v565 = vpop.f32.mrb[0].mxu0
          %v566 = vadd.f32 %v350, %v565
          %567 = vmatprep.mubr.f32.mxu0 0.0
          %568 = vmatmul.mubr.f32.gmra.mrb[0].mxu0 %v302
          %v569 = vpop.f32.mrb[0].mxu0
          %v570 = vadd.f32 %v346, %v569
          %v571 = vpop.f32.mrb[0].mxu0
          %v572 = vadd.f32 %v350, %v571
          %573 = vmatprep.mubr.f32.mxu0 0.0
          %574 = vmatmul.mubr.f32.gmra.mrb[0].mxu0 %v303
          %v575 = vpop.f32.mrb[0].mxu0
          %v576 = vadd.f32 %v346, %v575
          %v577 = vpop.f32.mrb[0].mxu0
          %v578 = vadd.f32 %v350, %v577
          %579 = vmatprep.mubr.f32.mxu0 0.0
          %580 = vmatmul.mubr.f32.gmra.mrb[0].mxu0 %v304
          %v581 = vpop.f32.mrb[0].mxu0
          %v582 = vadd.f32 %v346, %v581
          %v583 = vpop.f32.mrb[0].mxu0
          %v584 = vadd.f32 %v350, %v583
          %585 = vmatprep.mubr.f32.mxu0 0.0
          %586 = vmatmul.mubr.f32.gmra.mrb[0].mxu0 %v305
          %v587 = vpop.f32.mrb[0].mxu0
          %v588 = vadd.f32 %v346, %v587
          %v589 = vpop.f32.mrb[0].mxu0
          %v590 = vadd.f32 %v350, %v589
          %591 = vmatprep.mubr.f32.mxu0 0.0
          %592 = vmatmul.mubr.f32.gmra.mrb[0].mxu0 %v306
          %v593 = vpop.f32.mrb[0].mxu0
          %v594 = vadd.f32 %v346, %v593
          %v595 = vpop.f32.mrb[0].mxu0
          %v596 = vadd.f32 %v350, %v595
          %597 = vmatprep.mubr.f32.mxu0 0.0
          %598 = vmatmul.mubr.f32.gmra.mrb[0].mxu0 %v307
          %v599 = vpop.f32.mrb[0].mxu0
          %v600 = vadd.f32 %v346, %v599
          %v601 = vpop.f32.mrb[0].mxu0
          %v602 = vadd.f32 %v350, %v601
          %603 = vmatprep.mubr.f32.mxu0 0.0
          %604 = vmatmul.mubr.f32.gmra.mrb[0].mxu0 %v308
          %v605 = vpop.f32.mrb[0].mxu0
          %v606 = vadd.f32 %v346, %v605
          %v607 = vpop.f32.mrb[0].mxu0
          %v608 = vadd.f32 %v350, %v607
          %609 = vdwg.mxu0
          %610 = vst [vmem:[#allocation2] sm:$0xff] %v420
          %611 = vst [vmem:[#allocation2 + $0x8] sm:$0xff] %v426
          %612 = vst [vmem:[#allocation2 + $0x10] sm:$0xff] %v432
          %613 = vst [vmem:[#allocation2 + $0x18] sm:$0xff] %v438
          %614 = vst [vmem:[#allocation2 + $0x20] sm:$0xff] %v444
          %615 = vst [vmem:[#allocation2 + $0x28] sm:$0xff] %v450
          %616 = vst [vmem:[#allocation2 + $0x30] sm:$0xff] %v456
          %617 = vst [vmem:[#allocation2 + $0x38] sm:$0xff] %v462
          %618 = vst [vmem:[#allocation2 + $0x40] sm:$0xff] %v468
          %619 = vst [vmem:[#allocation2 + $0x48] sm:$0xff] %v474
          %620 = vst [vmem:[#allocation2 + $0x50] sm:$0xff] %v480
          %621 = vst [vmem:[#allocation2 + $0x58] sm:$0xff] %v486
          %622 = vst [vmem:[#allocation2 + $0x60] sm:$0xff] %v492
          %623 = vst [vmem:[#allocation2 + $0x68] sm:$0xff] %v498
          %624 = vst [vmem:[#allocation2 + $0x70] sm:$0xff] %v504
          %625 = vst [vmem:[#allocation2 + $0x78] sm:$0xff] %v510
          %626 = vst [vmem:[#allocation2 + $0x80] sm:$0xff] %v516
          %627 = vst [vmem:[#allocation2 + $0x88] sm:$0xff] %v522
          %628 = vst [vmem:[#allocation2 + $0x90] sm:$0xff] %v528
          %629 = vst [vmem:[#allocation2 + $0x98] sm:$0xff] %v534
          %630 = vst [vmem:[#allocation2 + $0xa0] sm:$0xff] %v540
          %631 = vst [vmem:[#allocation2 + $0xa8] sm:$0xff] %v546
          %632 = vst [vmem:[#allocation2 + $0xb0] sm:$0xff] %v552
          %633 = vst [vmem:[#allocation2 + $0xb8] sm:$0xff] %v558
          %634 = vst [vmem:[#allocation2 + $0xc0] sm:$0xff] %v564
          %635 = vst [vmem:[#allocation2 + $0xc8] sm:$0xff] %v570
          %636 = vst [vmem:[#allocation2 + $0xd0] sm:$0xff] %v576
          %637 = vst [vmem:[#allocation2 + $0xd8] sm:$0xff] %v582
          %638 = vst [vmem:[#allocation2 + $0xe0] sm:$0xff] %v588
          %639 = vst [vmem:[#allocation2 + $0xe8] sm:$0xff] %v594
          %640 = vst [vmem:[#allocation2 + $0xf0] sm:$0xff] %v600
          %641 = vst [vmem:[#allocation2 + $0xf8] sm:$0xff] %v606
          %vm642 = vcmask 15360
          %643 = vst.msk [vmem:[#allocation3] sm:$0xff] %vm642, %v422
          %644 = vst.msk [vmem:[#allocation3 + $0x8] sm:$0xff] %vm642, %v428
          %645 = vst.msk [vmem:[#allocation3 + $0x10] sm:$0xff] %vm642, %v434
          %646 = vst.msk [vmem:[#allocation3 + $0x18] sm:$0xff] %vm642, %v440
          %647 = vst.msk [vmem:[#allocation3 + $0x20] sm:$0xff] %vm642, %v446
          %648 = vst.msk [vmem:[#allocation3 + $0x28] sm:$0xff] %vm642, %v452
          %649 = vst.msk [vmem:[#allocation3 + $0x30] sm:$0xff] %vm642, %v458
          %650 = vst.msk [vmem:[#allocation3 + $0x38] sm:$0xff] %vm642, %v464
          %651 = vst.msk [vmem:[#allocation3 + $0x40] sm:$0xff] %vm642, %v470
          %652 = vst.msk [vmem:[#allocation3 + $0x48] sm:$0xff] %vm642, %v476
          %653 = vst.msk [vmem:[#allocation3 + $0x50] sm:$0xff] %vm642, %v482
          %654 = vst.msk [vmem:[#allocation3 + $0x58] sm:$0xff] %vm642, %v488
          %655 = vst.msk [vmem:[#allocation3 + $0x60] sm:$0xff] %vm642, %v494
          %656 = vst.msk [vmem:[#allocation3 + $0x68] sm:$0xff] %vm642, %v500
          %657 = vst.msk [vmem:[#allocation3 + $0x70] sm:$0xff] %vm642, %v506
          %658 = vst.msk [vmem:[#allocation3 + $0x78] sm:$0xff] %vm642, %v512
          %659 = vst.msk [vmem:[#allocation3 + $0x80] sm:$0xff] %vm642, %v518
          %660 = vst.msk [vmem:[#allocation3 + $0x88] sm:$0xff] %vm642, %v524
          %661 = vst.msk [vmem:[#allocation3 + $0x90] sm:$0xff] %vm642, %v530
          %662 = vst.msk [vmem:[#allocation3 + $0x98] sm:$0xff] %vm642, %v536
          %663 = vst.msk [vmem:[#allocation3 + $0xa0] sm:$0xff] %vm642, %v542
          %664 = vst.msk [vmem:[#allocation3 + $0xa8] sm:$0xff] %vm642, %v548
          %665 = vst.msk [vmem:[#allocation3 + $0xb0] sm:$0xff] %vm642, %v554
          %666 = vst.msk [vmem:[#allocation3 + $0xb8] sm:$0xff] %vm642, %v560
          %667 = vst.msk [vmem:[#allocation3 + $0xc0] sm:$0xff] %vm642, %v566
          %668 = vst.msk [vmem:[#allocation3 + $0xc8] sm:$0xff] %vm642, %v572
          %669 = vst.msk [vmem:[#allocation3 + $0xd0] sm:$0xff] %vm642, %v578
          %670 = vst.msk [vmem:[#allocation3 + $0xd8] sm:$0xff] %vm642, %v584
          %671 = vst.msk [vmem:[#allocation3 + $0xe0] sm:$0xff] %vm642, %v590
          %672 = vst.msk [vmem:[#allocation3 + $0xe8] sm:$0xff] %vm642, %v596
          %673 = vst.msk [vmem:[#allocation3 + $0xf0] sm:$0xff] %vm642, %v602
          %674 = vst.msk [vmem:[#allocation3 + $0xf8] sm:$0xff] %vm642, %v608
          %707 = vrot.lane.b32.xlu0 %v422, 126
          %v708 = vpop.permute.xlu0 %707
          %709 = vrot.lane.b32.xlu0 %v428, 126
          %v710 = vpop.permute.xlu0 %709
          %711 = vrot.lane.b32.xlu0 %v434, 126
          %v712 = vpop.permute.xlu0 %711
          %713 = vrot.lane.b32.xlu0 %v440, 126
          %v714 = vpop.permute.xlu0 %713
          %715 = vrot.lane.b32.xlu0 %v446, 126
          %v716 = vpop.permute.xlu0 %715
          %717 = vrot.lane.b32.xlu0 %v452, 126
          %v718 = vpop.permute.xlu0 %717
          %719 = vrot.lane.b32.xlu0 %v458, 126
          %v720 = vpop.permute.xlu0 %719
          %721 = vrot.lane.b32.xlu0 %v464, 126
          %v722 = vpop.permute.xlu0 %721
          %723 = vrot.lane.b32.xlu0 %v470, 126
          %v724 = vpop.permute.xlu0 %723
          %725 = vrot.lane.b32.xlu0 %v476, 126
          %v726 = vpop.permute.xlu0 %725
          %727 = vrot.lane.b32.xlu0 %v482, 126
          %v728 = vpop.permute.xlu0 %727
          %729 = vrot.lane.b32.xlu0 %v488, 126
          %v730 = vpop.permute.xlu0 %729
          %731 = vrot.lane.b32.xlu0 %v494, 126
          %v732 = vpop.permute.xlu0 %731
          %733 = vrot.lane.b32.xlu0 %v500, 126
          %v734 = vpop.permute.xlu0 %733
          %735 = vrot.lane.b32.xlu0 %v506, 126
          %v736 = vpop.permute.xlu0 %735
          %737 = vrot.lane.b32.xlu0 %v512, 126
          %v738 = vpop.permute.xlu0 %737
          %739 = vrot.lane.b32.xlu0 %v518, 126
          %v740 = vpop.permute.xlu0 %739
          %741 = vrot.lane.b32.xlu0 %v524, 126
          %v742 = vpop.permute.xlu0 %741
          %743 = vrot.lane.b32.xlu0 %v530, 126
          %v744 = vpop.permute.xlu0 %743
          %745 = vrot.lane.b32.xlu0 %v536, 126
          %v746 = vpop.permute.xlu0 %745
          %747 = vrot.lane.b32.xlu0 %v542, 126
          %v748 = vpop.permute.xlu0 %747
          %749 = vrot.lane.b32.xlu0 %v548, 126
          %v750 = vpop.permute.xlu0 %749
          %751 = vrot.lane.b32.xlu0 %v554, 126
          %v752 = vpop.permute.xlu0 %751
          %753 = vrot.lane.b32.xlu0 %v560, 126
          %v754 = vpop.permute.xlu0 %753
          %755 = vrot.lane.b32.xlu0 %v566, 126
          %v756 = vpop.permute.xlu0 %755
          %757 = vrot.lane.b32.xlu0 %v572, 126
          %v758 = vpop.permute.xlu0 %757
          %759 = vrot.lane.b32.xlu0 %v578, 126
          %v760 = vpop.permute.xlu0 %759
          %761 = vrot.lane.b32.xlu0 %v584, 126
          %v762 = vpop.permute.xlu0 %761
          %763 = vrot.lane.b32.xlu0 %v590, 126
          %v764 = vpop.permute.xlu0 %763
          %765 = vrot.lane.b32.xlu0 %v596, 126
          %v766 = vpop.permute.xlu0 %765
          %767 = vrot.lane.b32.xlu0 %v602, 126
          %v768 = vpop.permute.xlu0 %767
          %769 = vrot.lane.b32.xlu0 %v608, 126
          %v770 = vpop.permute.xlu0 %769
          %803 = vst.msk [vmem:[#allocation4] sm:$0xff] %vm642, %v708
          %804 = vst.msk [vmem:[#allocation4 + $0x8] sm:$0xff] %vm642, %v710
          %805 = vst.msk [vmem:[#allocation4 + $0x10] sm:$0xff] %vm642, %v712
          %806 = vst.msk [vmem:[#allocation4 + $0x18] sm:$0xff] %vm642, %v714
          %807 = vst.msk [vmem:[#allocation4 + $0x20] sm:$0xff] %vm642, %v716
          %808 = vst.msk [vmem:[#allocation4 + $0x28] sm:$0xff] %vm642, %v718
          %809 = vst.msk [vmem:[#allocation4 + $0x30] sm:$0xff] %vm642, %v720
          %810 = vst.msk [vmem:[#allocation4 + $0x38] sm:$0xff] %vm642, %v722
          %811 = vst.msk [vmem:[#allocation4 + $0x40] sm:$0xff] %vm642, %v724
          %812 = vst.msk [vmem:[#allocation4 + $0x48] sm:$0xff] %vm642, %v726
          %813 = vst.msk [vmem:[#allocation4 + $0x50] sm:$0xff] %vm642, %v728
          %814 = vst.msk [vmem:[#allocation4 + $0x58] sm:$0xff] %vm642, %v730
          %815 = vst.msk [vmem:[#allocation4 + $0x60] sm:$0xff] %vm642, %v732
          %816 = vst.msk [vmem:[#allocation4 + $0x68] sm:$0xff] %vm642, %v734
          %817 = vst.msk [vmem:[#allocation4 + $0x70] sm:$0xff] %vm642, %v736
          %818 = vst.msk [vmem:[#allocation4 + $0x78] sm:$0xff] %vm642, %v738
          %819 = vst.msk [vmem:[#allocation4 + $0x80] sm:$0xff] %vm642, %v740
          %820 = vst.msk [vmem:[#allocation4 + $0x88] sm:$0xff] %vm642, %v742
          %821 = vst.msk [vmem:[#allocation4 + $0x90] sm:$0xff] %vm642, %v744
          %822 = vst.msk [vmem:[#allocation4 + $0x98] sm:$0xff] %vm642, %v746
          %823 = vst.msk [vmem:[#allocation4 + $0xa0] sm:$0xff] %vm642, %v748
          %824 = vst.msk [vmem:[#allocation4 + $0xa8] sm:$0xff] %vm642, %v750
          %825 = vst.msk [vmem:[#allocation4 + $0xb0] sm:$0xff] %vm642, %v752
          %826 = vst.msk [vmem:[#allocation4 + $0xb8] sm:$0xff] %vm642, %v754
          %827 = vst.msk [vmem:[#allocation4 + $0xc0] sm:$0xff] %vm642, %v756
          %828 = vst.msk [vmem:[#allocation4 + $0xc8] sm:$0xff] %vm642, %v758
          %829 = vst.msk [vmem:[#allocation4 + $0xd0] sm:$0xff] %vm642, %v760
          %830 = vst.msk [vmem:[#allocation4 + $0xd8] sm:$0xff] %vm642, %v762
          %831 = vst.msk [vmem:[#allocation4 + $0xe0] sm:$0xff] %vm642, %v764
          %832 = vst.msk [vmem:[#allocation4 + $0xe8] sm:$0xff] %vm642, %v766
          %833 = vst.msk [vmem:[#allocation4 + $0xf0] sm:$0xff] %vm642, %v768
          %834 = vst.msk [vmem:[#allocation4 + $0xf8] sm:$0xff] %vm642, %v770
        $region44: #{tpu_custom_call.1} parent=35 // pred_fallthru
          _
        %s835 = smul.u32 %s32, 128
        %s836 = scalar_lea.vmem [#allocation3], %s835
        %v837 = vld [vmem:[%s836] sm:$0xff]
        %v838 = vld [vmem:[%s836 + $0x8] sm:$0xff]
        %v839 = vld [vmem:[%s836 + $0x10] sm:$0xff]
        %v840 = vld [vmem:[%s836 + $0x18] sm:$0xff]
        %v841 = vld [vmem:[%s836 + $0x20] sm:$0xff]
        %v842 = vld [vmem:[%s836 + $0x28] sm:$0xff]
        %v843 = vld [vmem:[%s836 + $0x30] sm:$0xff]
        %v844 = vld [vmem:[%s836 + $0x38] sm:$0xff]
        %v845 = vld [vmem:[%s836 + $0x40] sm:$0xff]
        %v846 = vld [vmem:[%s836 + $0x48] sm:$0xff]
        %v847 = vld [vmem:[%s836 + $0x50] sm:$0xff]
        %v848 = vld [vmem:[%s836 + $0x58] sm:$0xff]
        %v849 = vld [vmem:[%s836 + $0x60] sm:$0xff]
        %v850 = vld [vmem:[%s836 + $0x68] sm:$0xff]
        %v851 = vld [vmem:[%s836 + $0x70] sm:$0xff]
        %v852 = vld [vmem:[%s836 + $0x78] sm:$0xff]
        %v853 = vld [vmem:[#allocation4] sm:$0xff]
        %v854 = vld [vmem:[#allocation4 + $0x8] sm:$0xff]
        %v855 = vld [vmem:[#allocation4 + $0x10] sm:$0xff]
        %v856 = vld [vmem:[#allocation4 + $0x18] sm:$0xff]
        %v857 = vld [vmem:[#allocation4 + $0x20] sm:$0xff]
        %v858 = vld [vmem:[#allocation4 + $0x28] sm:$0xff]
        %v859 = vld [vmem:[#allocation4 + $0x30] sm:$0xff]
        %v860 = vld [vmem:[#allocation4 + $0x38] sm:$0xff]
        %v861 = vld [vmem:[#allocation4 + $0x40] sm:$0xff]
        %v862 = vld [vmem:[#allocation4 + $0x48] sm:$0xff]
        %v863 = vld [vmem:[#allocation4 + $0x50] sm:$0xff]
        %v864 = vld [vmem:[#allocation4 + $0x58] sm:$0xff]
        %v865 = vld [vmem:[#allocation4 + $0x60] sm:$0xff]
        %v866 = vld [vmem:[#allocation4 + $0x68] sm:$0xff]
        %v867 = vld [vmem:[#allocation4 + $0x70] sm:$0xff]
        %v868 = vld [vmem:[#allocation4 + $0x78] sm:$0xff]
        %v869 = vld [vmem:[#allocation4 + $0x80] sm:$0xff]
        %v870 = vld [vmem:[#allocation4 + $0x88] sm:$0xff]
        %v871 = vld [vmem:[#allocation4 + $0x90] sm:$0xff]
        %v872 = vld [vmem:[#allocation4 + $0x98] sm:$0xff]
        %v873 = vld [vmem:[#allocation4 + $0xa0] sm:$0xff]
        %v874 = vld [vmem:[#allocation4 + $0xa8] sm:$0xff]
        %v875 = vld [vmem:[#allocation4 + $0xb0] sm:$0xff]
        %v876 = vld [vmem:[#allocation4 + $0xb8] sm:$0xff]
        %v877 = vld [vmem:[#allocation4 + $0xc0] sm:$0xff]
        %v878 = vld [vmem:[#allocation4 + $0xc8] sm:$0xff]
        %v879 = vld [vmem:[#allocation4 + $0xd0] sm:$0xff]
        %v880 = vld [vmem:[#allocation4 + $0xd8] sm:$0xff]
        %v881 = vld [vmem:[#allocation4 + $0xe0] sm:$0xff]
        %v882 = vld [vmem:[#allocation4 + $0xe8] sm:$0xff]
        %v883 = vld [vmem:[#allocation4 + $0xf0] sm:$0xff]
        %v884 = vld [vmem:[#allocation4 + $0xf8] sm:$0xff]
        %vm885 = vcmask 15360
        %v887 = vsel %vm885, %v837, 0
        %v890 = vsel %vm885, %v838, 0
        %v893 = vsel %vm885, %v839, 0
        %v896 = vsel %vm885, %v840, 0
        %v899 = vsel %vm885, %v841, 0
        %v902 = vsel %vm885, %v842, 0
        %v905 = vsel %vm885, %v843, 0
        %v908 = vsel %vm885, %v844, 0
        %v911 = vsel %vm885, %v845, 0
        %v914 = vsel %vm885, %v846, 0
        %v917 = vsel %vm885, %v847, 0
        %v920 = vsel %vm885, %v848, 0
        %v923 = vsel %vm885, %v849, 0
        %v926 = vsel %vm885, %v850, 0
        %v929 = vsel %vm885, %v851, 0
        %v932 = vsel %vm885, %v852, 0
        %v935 = vsel %vm885, %v853, 0
        %v938 = vsel %vm885, %v854, 0
        %v941 = vsel %vm885, %v855, 0
        %v944 = vsel %vm885, %v856, 0
        %v947 = vsel %vm885, %v857, 0
        %v950 = vsel %vm885, %v858, 0
        %v953 = vsel %vm885, %v859, 0
        %v956 = vsel %vm885, %v860, 0
        %v959 = vsel %vm885, %v861, 0
        %v962 = vsel %vm885, %v862, 0
        %v965 = vsel %vm885, %v863, 0
        %v968 = vsel %vm885, %v864, 0
        %v971 = vsel %vm885, %v865, 0
        %v974 = vsel %vm885, %v866, 0
        %v977 = vsel %vm885, %v867, 0
        %v980 = vsel %vm885, %v868, 0
        %v983 = vsel %vm885, %v869, 0
        %v986 = vsel %vm885, %v870, 0
        %v989 = vsel %vm885, %v871, 0
        %v992 = vsel %vm885, %v872, 0
        %v995 = vsel %vm885, %v873, 0
        %v998 = vsel %vm885, %v874, 0
        %v1001 = vsel %vm885, %v875, 0
        %v1004 = vsel %vm885, %v876, 0
        %v1007 = vsel %vm885, %v877, 0
        %v1010 = vsel %vm885, %v878, 0
        %v1013 = vsel %vm885, %v879, 0
        %v1016 = vsel %vm885, %v880, 0
        %v1019 = vsel %vm885, %v881, 0
        %v1022 = vsel %vm885, %v882, 0
        %v1025 = vsel %vm885, %v883, 0
        %v1028 = vsel %vm885, %v884, 0
        %1030 = vmatprep.subr.mxu0 0.0
        %1031 = vmatpush1.xpose.msra.mxu0 %v935
        %1032 = vmatprep.subr.mxu0 0.0
        %1033 = vmatpush1.xpose.msra.mxu0 %v938
        %1034 = vmatprep.subr.mxu0 0.0
        %1035 = vmatpush1.xpose.msra.mxu0 %v941
        %1036 = vmatprep.subr.mxu0 0.0
        %1037 = vmatpush1.xpose.msra.mxu0 %v944
        %1038 = vmatprep.subr.mxu0 0.0
        %1039 = vmatpush1.xpose.msra.mxu0 %v947
        %1040 = vmatprep.subr.mxu0 0.0
        %1041 = vmatpush1.xpose.msra.mxu0 %v950
        %1042 = vmatprep.subr.mxu0 0.0
        %1043 = vmatpush1.xpose.msra.mxu0 %v953
        %1044 = vmatprep.subr.mxu0 0.0
        %1045 = vmatpush1.xpose.msra.mxu0 %v956
        %1046 = vmatprep.subr.mxu0 0.0
        %1047 = vmatpush1.xpose.msra.mxu0 %v959
        %1048 = vmatprep.subr.mxu0 0.0
        %1049 = vmatpush1.xpose.msra.mxu0 %v962
        %1050 = vmatprep.subr.mxu0 0.0
        %1051 = vmatpush1.xpose.msra.mxu0 %v965
        %1052 = vmatprep.subr.mxu0 0.0
        %1053 = vmatpush1.xpose.msra.mxu0 %v968
        %1054 = vmatprep.subr.mxu0 0.0
        %1055 = vmatpush1.xpose.msra.mxu0 %v971
        %1056 = vmatprep.subr.mxu0 0.0
        %1057 = vmatpush1.xpose.msra.mxu0 %v974
        %1058 = vmatprep.subr.mxu0 0.0
        %1059 = vmatpush1.xpose.msra.mxu0 %v977
        %1060 = vmatprep.subr.mxu0 0.0
        %1061 = vmatpush1.xpose.msra.mxu0 %v980
        %1062 = vmatprep.subr.mxu0 0.0
        %1063 = vmatpush1.xpose.msra.mxu0 %v983
        %1064 = vmatprep.subr.mxu0 0.0
        %1065 = vmatpush1.xpose.msra.mxu0 %v986
        %1066 = vmatprep.subr.mxu0 0.0
        %1067 = vmatpush1.xpose.msra.mxu0 %v989
        %1068 = vmatprep.subr.mxu0 0.0
        %1069 = vmatpush1.xpose.msra.mxu0 %v992
        %1070 = vmatprep.subr.mxu0 0.0
        %1071 = vmatpush1.xpose.msra.mxu0 %v995
        %1072 = vmatprep.subr.mxu0 0.0
        %1073 = vmatpush1.xpose.msra.mxu0 %v998
        %1074 = vmatprep.subr.mxu0 0.0
        %1075 = vmatpush1.xpose.msra.mxu0 %v1001
        %1076 = vmatprep.subr.mxu0 0.0
        %1077 = vmatpush1.xpose.msra.mxu0 %v1004
        %1078 = vmatprep.subr.mxu0 0.0
        %1079 = vmatpush1.xpose.msra.mxu0 %v1007
        %1080 = vmatprep.subr.mxu0 0.0
        %1081 = vmatpush1.xpose.msra.mxu0 %v1010
        %1082 = vmatprep.subr.mxu0 0.0
        %1083 = vmatpush1.xpose.msra.mxu0 %v1013
        %1084 = vmatprep.subr.mxu0 0.0
        %1085 = vmatpush1.xpose.msra.mxu0 %v1016
        %1086 = vmatprep.subr.mxu0 0.0
        %1087 = vmatpush1.xpose.msra.mxu0 %v1019
        %1088 = vmatprep.subr.mxu0 0.0
        %1089 = vmatpush1.xpose.msra.mxu0 %v1022
        %1090 = vmatprep.subr.mxu0 0.0
        %1091 = vmatpush1.xpose.msra.mxu0 %v1025
        %1092 = vmatprep.subr.mxu0 0.0
        %1093 = vmatpush1.xpose.msra.mxu0 %v1028
        %1094 = vmatprep.mubr.f32.mxu0 0.0
        %1095 = vmatmul.mubr.f32.gmra.mrb[0].mxu0 %v887
        %v1096 = vpop.f32.mrb[0].mxu0
        %v1097 = vadd.f32 0.0, %v1096
        %v1098 = vpop.f32.mrb[0].mxu0
        %v1099 = vadd.f32 0.0, %v1098
        %1100 = vmatprep.mubr.f32.mxu0 0.0
        %1101 = vmatmul.mubr.f32.gmra.mrb[0].mxu0 %v890
        %v1102 = vpop.f32.mrb[0].mxu0
        %v1103 = vadd.f32 0.0, %v1102
        %v1104 = vpop.f32.mrb[0].mxu0
        %v1105 = vadd.f32 0.0, %v1104
        %1106 = vmatprep.mubr.f32.mxu0 0.0
        %1107 = vmatmul.mubr.f32.gmra.mrb[0].mxu0 %v893
        %v1108 = vpop.f32.mrb[0].mxu0
        %v1109 = vadd.f32 0.0, %v1108
        %v1110 = vpop.f32.mrb[0].mxu0
        %v1111 = vadd.f32 0.0, %v1110
        %1112 = vmatprep.mubr.f32.mxu0 0.0
        %1113 = vmatmul.mubr.f32.gmra.mrb[0].mxu0 %v896
        %v1114 = vpop.f32.mrb[0].mxu0
        %v1115 = vadd.f32 0.0, %v1114
        %v1116 = vpop.f32.mrb[0].mxu0
        %v1117 = vadd.f32 0.0, %v1116
        %1118 = vmatprep.mubr.f32.mxu0 0.0
        %1119 = vmatmul.mubr.f32.gmra.mrb[0].mxu0 %v899
        %v1120 = vpop.f32.mrb[0].mxu0
        %v1121 = vadd.f32 0.0, %v1120
        %v1122 = vpop.f32.mrb[0].mxu0
        %v1123 = vadd.f32 0.0, %v1122
        %1124 = vmatprep.mubr.f32.mxu0 0.0
        %1125 = vmatmul.mubr.f32.gmra.mrb[0].mxu0 %v902
        %v1126 = vpop.f32.mrb[0].mxu0
        %v1127 = vadd.f32 0.0, %v1126
        %v1128 = vpop.f32.mrb[0].mxu0
        %v1129 = vadd.f32 0.0, %v1128
        %1130 = vmatprep.mubr.f32.mxu0 0.0
        %1131 = vmatmul.mubr.f32.gmra.mrb[0].mxu0 %v905
        %v1132 = vpop.f32.mrb[0].mxu0
        %v1133 = vadd.f32 0.0, %v1132
        %v1134 = vpop.f32.mrb[0].mxu0
        %v1135 = vadd.f32 0.0, %v1134
        %1136 = vmatprep.mubr.f32.mxu0 0.0
        %1137 = vmatmul.mubr.f32.gmra.mrb[0].mxu0 %v908
        %v1138 = vpop.f32.mrb[0].mxu0
        %v1139 = vadd.f32 0.0, %v1138
        %v1140 = vpop.f32.mrb[0].mxu0
        %v1141 = vadd.f32 0.0, %v1140
        %1142 = vmatprep.mubr.f32.mxu0 0.0
        %1143 = vmatmul.mubr.f32.gmra.mrb[0].mxu0 %v911
        %v1144 = vpop.f32.mrb[0].mxu0
        %v1145 = vadd.f32 0.0, %v1144
        %v1146 = vpop.f32.mrb[0].mxu0
        %v1147 = vadd.f32 0.0, %v1146
        %1148 = vmatprep.mubr.f32.mxu0 0.0
        %1149 = vmatmul.mubr.f32.gmra.mrb[0].mxu0 %v914
        %v1150 = vpop.f32.mrb[0].mxu0
        %v1151 = vadd.f32 0.0, %v1150
        %v1152 = vpop.f32.mrb[0].mxu0
        %v1153 = vadd.f32 0.0, %v1152
        %1154 = vmatprep.mubr.f32.mxu0 0.0
        %1155 = vmatmul.mubr.f32.gmra.mrb[0].mxu0 %v917
        %v1156 = vpop.f32.mrb[0].mxu0
        %v1157 = vadd.f32 0.0, %v1156
        %v1158 = vpop.f32.mrb[0].mxu0
        %v1159 = vadd.f32 0.0, %v1158
        %1160 = vmatprep.mubr.f32.mxu0 0.0
        %1161 = vmatmul.mubr.f32.gmra.mrb[0].mxu0 %v920
        %v1162 = vpop.f32.mrb[0].mxu0
        %v1163 = vadd.f32 0.0, %v1162
        %v1164 = vpop.f32.mrb[0].mxu0
        %v1165 = vadd.f32 0.0, %v1164
        %1166 = vmatprep.mubr.f32.mxu0 0.0
        %1167 = vmatmul.mubr.f32.gmra.mrb[0].mxu0 %v923
        %v1168 = vpop.f32.mrb[0].mxu0
        %v1169 = vadd.f32 0.0, %v1168
        %v1170 = vpop.f32.mrb[0].mxu0
        %v1171 = vadd.f32 0.0, %v1170
        %1172 = vmatprep.mubr.f32.mxu0 0.0
        %1173 = vmatmul.mubr.f32.gmra.mrb[0].mxu0 %v926
        %v1174 = vpop.f32.mrb[0].mxu0
        %v1175 = vadd.f32 0.0, %v1174
        %v1176 = vpop.f32.mrb[0].mxu0
        %v1177 = vadd.f32 0.0, %v1176
        %1178 = vmatprep.mubr.f32.mxu0 0.0
        %1179 = vmatmul.mubr.f32.gmra.mrb[0].mxu0 %v929
        %v1180 = vpop.f32.mrb[0].mxu0
        %v1181 = vadd.f32 0.0, %v1180
        %v1182 = vpop.f32.mrb[0].mxu0
        %v1183 = vadd.f32 0.0, %v1182
        %1184 = vmatprep.mubr.f32.mxu0 0.0
        %1185 = vmatmul.mubr.f32.gmra.mrb[0].mxu0 %v932
        %v1186 = vpop.f32.mrb[0].mxu0
        %v1187 = vadd.f32 0.0, %v1186
        %v1188 = vpop.f32.mrb[0].mxu0
        %v1189 = vadd.f32 0.0, %v1188
        %1190 = vdwg.mxu0
        %1191 = vst [vmem:[%s270] sm:$0xff] %v1097
        %1192 = vst [vmem:[%s270 + $0x8] sm:$0xff] %v1099
        %1193 = vst [vmem:[%s270 + $0x10] sm:$0xff] %v1103
        %1194 = vst [vmem:[%s270 + $0x18] sm:$0xff] %v1105
        %1195 = vst [vmem:[%s270 + $0x20] sm:$0xff] %v1109
        %1196 = vst [vmem:[%s270 + $0x28] sm:$0xff] %v1111
        %1197 = vst [vmem:[%s270 + $0x30] sm:$0xff] %v1115
        %1198 = vst [vmem:[%s270 + $0x38] sm:$0xff] %v1117
        %1199 = vst [vmem:[%s270 + $0x40] sm:$0xff] %v1121
        %1200 = vst [vmem:[%s270 + $0x48] sm:$0xff] %v1123
        %1201 = vst [vmem:[%s270 + $0x50] sm:$0xff] %v1127
        %1202 = vst [vmem:[%s270 + $0x58] sm:$0xff] %v1129
        %1203 = vst [vmem:[%s270 + $0x60] sm:$0xff] %v1133
        %1204 = vst [vmem:[%s270 + $0x68] sm:$0xff] %v1135
        %1205 = vst [vmem:[%s270 + $0x70] sm:$0xff] %v1139
        %1206 = vst [vmem:[%s270 + $0x78] sm:$0xff] %v1141
        %1207 = vst [vmem:[%s270 + $0x80] sm:$0xff] %v1145
        %1208 = vst [vmem:[%s270 + $0x88] sm:$0xff] %v1147
        %1209 = vst [vmem:[%s270 + $0x90] sm:$0xff] %v1151
        %1210 = vst [vmem:[%s270 + $0x98] sm:$0xff] %v1153
        %1211 = vst [vmem:[%s270 + $0xa0] sm:$0xff] %v1157
        %1212 = vst [vmem:[%s270 + $0xa8] sm:$0xff] %v1159
        %1213 = vst [vmem:[%s270 + $0xb0] sm:$0xff] %v1163
        %1214 = vst [vmem:[%s270 + $0xb8] sm:$0xff] %v1165
        %1215 = vst [vmem:[%s270 + $0xc0] sm:$0xff] %v1169
        %1216 = vst [vmem:[%s270 + $0xc8] sm:$0xff] %v1171
        %1217 = vst [vmem:[%s270 + $0xd0] sm:$0xff] %v1175
        %1218 = vst [vmem:[%s270 + $0xd8] sm:$0xff] %v1177
        %1219 = vst [vmem:[%s270 + $0xe0] sm:$0xff] %v1181
        %1220 = vst [vmem:[%s270 + $0xe8] sm:$0xff] %v1183
        %1221 = vst [vmem:[%s270 + $0xf0] sm:$0xff] %v1187
        %1222 = vst [vmem:[%s270 + $0xf8] sm:$0xff] %v1189
        %v1223 = vmax.f32 %v1097, %v1099
        %1224 = vmax.xlane.f32.xlu0 %v1223
        %v1225 = vpop.xlane.xlu0 %1224
        %v1226 = vmax.f32 %v1103, %v1105
        %1227 = vmax.xlane.f32.xlu0 %v1226
        %v1228 = vpop.xlane.xlu0 %1227
        %v1229 = vmax.f32 %v1109, %v1111
        %1230 = vmax.xlane.f32.xlu0 %v1229
        %v1231 = vpop.xlane.xlu0 %1230
        %v1232 = vmax.f32 %v1115, %v1117
        %1233 = vmax.xlane.f32.xlu0 %v1232
        %v1234 = vpop.xlane.xlu0 %1233
        %v1235 = vmax.f32 %v1121, %v1123
        %1236 = vmax.xlane.f32.xlu0 %v1235
        %v1237 = vpop.xlane.xlu0 %1236
        %v1238 = vmax.f32 %v1127, %v1129
        %1239 = vmax.xlane.f32.xlu0 %v1238
        %v1240 = vpop.xlane.xlu0 %1239
        %v1241 = vmax.f32 %v1133, %v1135
        %1242 = vmax.xlane.f32.xlu0 %v1241
        %v1243 = vpop.xlane.xlu0 %1242
        %v1244 = vmax.f32 %v1139, %v1141
        %1245 = vmax.xlane.f32.xlu0 %v1244
        %v1246 = vpop.xlane.xlu0 %1245
        %v1247 = vmax.f32 %v1145, %v1147
        %1248 = vmax.xlane.f32.xlu0 %v1247
        %v1249 = vpop.xlane.xlu0 %1248
        %v1250 = vmax.f32 %v1151, %v1153
        %1251 = vmax.xlane.f32.xlu0 %v1250
        %v1252 = vpop.xlane.xlu0 %1251
        %v1253 = vmax.f32 %v1157, %v1159
        %1254 = vmax.xlane.f32.xlu0 %v1253
        %v1255 = vpop.xlane.xlu0 %1254
        %v1256 = vmax.f32 %v1163, %v1165
        %1257 = vmax.xlane.f32.xlu0 %v1256
        %v1258 = vpop.xlane.xlu0 %1257
        %v1259 = vmax.f32 %v1169, %v1171
        %1260 = vmax.xlane.f32.xlu0 %v1259
        %v1261 = vpop.xlane.xlu0 %1260
        %v1262 = vmax.f32 %v1175, %v1177
        %1263 = vmax.xlane.f32.xlu0 %v1262
        %v1264 = vpop.xlane.xlu0 %1263
        %v1265 = vmax.f32 %v1181, %v1183
        %1266 = vmax.xlane.f32.xlu0 %v1265
        %v1267 = vpop.xlane.xlu0 %1266
        %v1268 = vmax.f32 %v1187, %v1189
        %1269 = vmax.xlane.f32.xlu0 %v1268
        %v1270 = vpop.xlane.xlu0 %1269
        %v1271 = vsub.f32 %v1097, %v1225
        %v1272 = vsub.f32 %v1099, %v1225
        %v1273 = vsub.f32 %v1103, %v1228
        %v1274 = vsub.f32 %v1105, %v1228
        %v1275 = vsub.f32 %v1109, %v1231
        %v1276 = vsub.f32 %v1111, %v1231
        %v1277 = vsub.f32 %v1115, %v1234
        %v1278 = vsub.f32 %v1117, %v1234
        %v1279 = vsub.f32 %v1121, %v1237
        %v1280 = vsub.f32 %v1123, %v1237
        %v1281 = vsub.f32 %v1127, %v1240
        %v1282 = vsub.f32 %v1129, %v1240
        %v1283 = vsub.f32 %v1133, %v1243
        %v1284 = vsub.f32 %v1135, %v1243
        %v1285 = vsub.f32 %v1139, %v1246
        %v1286 = vsub.f32 %v1141, %v1246
        %v1287 = vsub.f32 %v1145, %v1249
        %v1288 = vsub.f32 %v1147, %v1249
        %v1289 = vsub.f32 %v1151, %v1252
        %v1290 = vsub.f32 %v1153, %v1252
        %v1291 = vsub.f32 %v1157, %v1255
        %v1292 = vsub.f32 %v1159, %v1255
        %v1293 = vsub.f32 %v1163, %v1258
        %v1294 = vsub.f32 %v1165, %v1258
        %v1295 = vsub.f32 %v1169, %v1261
        %v1296 = vsub.f32 %v1171, %v1261
        %v1297 = vsub.f32 %v1175, %v1264
        %v1298 = vsub.f32 %v1177, %v1264
        %v1299 = vsub.f32 %v1181, %v1267
        %v1300 = vsub.f32 %v1183, %v1267
        %v1301 = vsub.f32 %v1187, %v1270
        %v1302 = vsub.f32 %v1189, %v1270
        %v1303 = vmul.f32 %v1271, 1.442695
        %v1304 = vpow.pop %v1303
        %v1305 = vmul.f32 %v1272, 1.442695
        %v1306 = vpow.pop %v1305
        %v1307 = vmul.f32 %v1273, 1.442695
        %v1308 = vpow.pop %v1307
        %v1309 = vmul.f32 %v1274, 1.442695
        %v1310 = vpow.pop %v1309
        %v1311 = vmul.f32 %v1275, 1.442695
        %v1312 = vpow.pop %v1311
        %v1313 = vmul.f32 %v1276, 1.442695
        %v1314 = vpow.pop %v1313
        %v1315 = vmul.f32 %v1277, 1.442695
        %v1316 = vpow.pop %v1315
        %v1317 = vmul.f32 %v1278, 1.442695
        %v1318 = vpow.pop %v1317
        %v1319 = vmul.f32 %v1279, 1.442695
        %v1320 = vpow.pop %v1319
        %v1321 = vmul.f32 %v1280, 1.442695
        %v1322 = vpow.pop %v1321
        %v1323 = vmul.f32 %v1281, 1.442695
        %v1324 = vpow.pop %v1323
        %v1325 = vmul.f32 %v1282, 1.442695
        %v1326 = vpow.pop %v1325
        %v1327 = vmul.f32 %v1283, 1.442695
        %v1328 = vpow.pop %v1327
        %v1329 = vmul.f32 %v1284, 1.442695
        %v1330 = vpow.pop %v1329
        %v1331 = vmul.f32 %v1285, 1.442695
        %v1332 = vpow.pop %v1331
        %v1333 = vmul.f32 %v1286, 1.442695
        %v1334 = vpow.pop %v1333
        %v1335 = vmul.f32 %v1287, 1.442695
        %v1336 = vpow.pop %v1335
        %v1337 = vmul.f32 %v1288, 1.442695
        %v1338 = vpow.pop %v1337
        %v1339 = vmul.f32 %v1289, 1.442695
        %v1340 = vpow.pop %v1339
        %v1341 = vmul.f32 %v1290, 1.442695
        %v1342 = vpow.pop %v1341
        %v1343 = vmul.f32 %v1291, 1.442695
        %v1344 = vpow.pop %v1343
        %v1345 = vmul.f32 %v1292, 1.442695
        %v1346 = vpow.pop %v1345
        %v1347 = vmul.f32 %v1293, 1.442695
        %v1348 = vpow.pop %v1347
        %v1349 = vmul.f32 %v1294, 1.442695
        %v1350 = vpow.pop %v1349
        %v1351 = vmul.f32 %v1295, 1.442695
        %v1352 = vpow.pop %v1351
        %v1353 = vmul.f32 %v1296, 1.442695
        %v1354 = vpow.pop %v1353
        %v1355 = vmul.f32 %v1297, 1.442695
        %v1356 = vpow.pop %v1355
        %v1357 = vmul.f32 %v1298, 1.442695
        %v1358 = vpow.pop %v1357
        %v1359 = vmul.f32 %v1299, 1.442695
        %v1360 = vpow.pop %v1359
        %v1361 = vmul.f32 %v1300, 1.442695
        %v1362 = vpow.pop %v1361
        %v1363 = vmul.f32 %v1301, 1.442695
        %v1364 = vpow.pop %v1363
        %v1365 = vmul.f32 %v1302, 1.442695
        %v1366 = vpow.pop %v1365
        %v1367 = vadd.f32 %v1304, %v1306
        %1368 = vadd.xlane.f32.xlu0 %v1367
        %v1369 = vpop.xlane.xlu0 %1368
        %v1370 = vadd.f32 %v1308, %v1310
        %1371 = vadd.xlane.f32.xlu0 %v1370
        %v1372 = vpop.xlane.xlu0 %1371
        %v1373 = vadd.f32 %v1312, %v1314
        %1374 = vadd.xlane.f32.xlu0 %v1373
        %v1375 = vpop.xlane.xlu0 %1374
        %v1376 = vadd.f32 %v1316, %v1318
        %1377 = vadd.xlane.f32.xlu0 %v1376
        %v1378 = vpop.xlane.xlu0 %1377
        %v1379 = vadd.f32 %v1320, %v1322
        %1380 = vadd.xlane.f32.xlu0 %v1379
        %v1381 = vpop.xlane.xlu0 %1380
        %v1382 = vadd.f32 %v1324, %v1326
        %1383 = vadd.xlane.f32.xlu0 %v1382
        %v1384 = vpop.xlane.xlu0 %1383
        %v1385 = vadd.f32 %v1328, %v1330
        %1386 = vadd.xlane.f32.xlu0 %v1385
        %v1387 = vpop.xlane.xlu0 %1386
        %v1388 = vadd.f32 %v1332, %v1334
        %1389 = vadd.xlane.f32.xlu0 %v1388
        %v1390 = vpop.xlane.xlu0 %1389
        %v1391 = vadd.f32 %v1336, %v1338
        %1392 = vadd.xlane.f32.xlu0 %v1391
        %v1393 = vpop.xlane.xlu0 %1392
        %v1394 = vadd.f32 %v1340, %v1342
        %1395 = vadd.xlane.f32.xlu0 %v1394
        %v1396 = vpop.xlane.xlu0 %1395
        %v1397 = vadd.f32 %v1344, %v1346
        %1398 = vadd.xlane.f32.xlu0 %v1397
        %v1399 = vpop.xlane.xlu0 %1398
        %v1400 = vadd.f32 %v1348, %v1350
        %1401 = vadd.xlane.f32.xlu0 %v1400
        %v1402 = vpop.xlane.xlu0 %1401
        %v1403 = vadd.f32 %v1352, %v1354
        %1404 = vadd.xlane.f32.xlu0 %v1403
        %v1405 = vpop.xlane.xlu0 %1404
        %v1406 = vadd.f32 %v1356, %v1358
        %1407 = vadd.xlane.f32.xlu0 %v1406
        %v1408 = vpop.xlane.xlu0 %1407
        %v1409 = vadd.f32 %v1360, %v1362
        %1410 = vadd.xlane.f32.xlu0 %v1409
        %v1411 = vpop.xlane.xlu0 %1410
        %v1412 = vadd.f32 %v1364, %v1366
        %1413 = vadd.xlane.f32.xlu0 %v1412
        %v1414 = vpop.xlane.xlu0 %1413
        %v1415 = vrcp.pop %v1369
        %v1416 = vrcp.pop %v1372
        %v1417 = vrcp.pop %v1375
        %v1418 = vrcp.pop %v1378
        %v1419 = vrcp.pop %v1381
        %v1420 = vrcp.pop %v1384
        %v1421 = vrcp.pop %v1387
        %v1422 = vrcp.pop %v1390
        %v1423 = vrcp.pop %v1393
        %v1424 = vrcp.pop %v1396
        %v1425 = vrcp.pop %v1399
        %v1426 = vrcp.pop %v1402
        %v1427 = vrcp.pop %v1405
        %v1428 = vrcp.pop %v1408
        %v1429 = vrcp.pop %v1411
        %v1430 = vrcp.pop %v1414
        %v1431 = vmul.f32 %v1304, %v1415
        %v1432 = vmul.f32 %v1306, %v1415
        %v1433 = vmul.f32 %v1308, %v1416
        %v1434 = vmul.f32 %v1310, %v1416
        %v1435 = vmul.f32 %v1312, %v1417
        %v1436 = vmul.f32 %v1314, %v1417
        %v1437 = vmul.f32 %v1316, %v1418
        %v1438 = vmul.f32 %v1318, %v1418
        %v1439 = vmul.f32 %v1320, %v1419
        %v1440 = vmul.f32 %v1322, %v1419
        %v1441 = vmul.f32 %v1324, %v1420
        %v1442 = vmul.f32 %v1326, %v1420
        %v1443 = vmul.f32 %v1328, %v1421
        %v1444 = vmul.f32 %v1330, %v1421
        %v1445 = vmul.f32 %v1332, %v1422
        %v1446 = vmul.f32 %v1334, %v1422
        %v1447 = vmul.f32 %v1336, %v1423
        %v1448 = vmul.f32 %v1338, %v1423
        %v1449 = vmul.f32 %v1340, %v1424
        %v1450 = vmul.f32 %v1342, %v1424
        %v1451 = vmul.f32 %v1344, %v1425
        %v1452 = vmul.f32 %v1346, %v1425
        %v1453 = vmul.f32 %v1348, %v1426
        %v1454 = vmul.f32 %v1350, %v1426
        %v1455 = vmul.f32 %v1352, %v1427
        %v1456 = vmul.f32 %v1354, %v1427
        %v1457 = vmul.f32 %v1356, %v1428
        %v1458 = vmul.f32 %v1358, %v1428
        %v1459 = vmul.f32 %v1360, %v1429
        %v1460 = vmul.f32 %v1362, %v1429
        %v1461 = vmul.f32 %v1364, %v1430
        %v1462 = vmul.f32 %v1366, %v1430
        %v1463 = vld [vmem:[#allocation2] sm:$0xff]
        %v1464 = vld [vmem:[#allocation2 + $0x8] sm:$0xff]
        %v1465 = vld [vmem:[#allocation2 + $0x10] sm:$0xff]
        %v1466 = vld [vmem:[#allocation2 + $0x18] sm:$0xff]
        %v1467 = vld [vmem:[#allocation2 + $0x20] sm:$0xff]
        %v1468 = vld [vmem:[#allocation2 + $0x28] sm:$0xff]
        %v1469 = vld [vmem:[#allocation2 + $0x30] sm:$0xff]
        %v1470 = vld [vmem:[#allocation2 + $0x38] sm:$0xff]
        %v1471 = vld [vmem:[#allocation2 + $0x40] sm:$0xff]
        %v1472 = vld [vmem:[#allocation2 + $0x48] sm:$0xff]
        %v1473 = vld [vmem:[#allocation2 + $0x50] sm:$0xff]
        %v1474 = vld [vmem:[#allocation2 + $0x58] sm:$0xff]
        %v1475 = vld [vmem:[#allocation2 + $0x60] sm:$0xff]
        %v1476 = vld [vmem:[#allocation2 + $0x68] sm:$0xff]
        %v1477 = vld [vmem:[#allocation2 + $0x70] sm:$0xff]
        %v1478 = vld [vmem:[#allocation2 + $0x78] sm:$0xff]
        %v1479 = vld [vmem:[#allocation2 + $0x80] sm:$0xff]
        %v1480 = vld [vmem:[#allocation2 + $0x88] sm:$0xff]
        %v1481 = vld [vmem:[#allocation2 + $0x90] sm:$0xff]
        %v1482 = vld [vmem:[#allocation2 + $0x98] sm:$0xff]
        %v1483 = vld [vmem:[#allocation2 + $0xa0] sm:$0xff]
        %v1484 = vld [vmem:[#allocation2 + $0xa8] sm:$0xff]
        %v1485 = vld [vmem:[#allocation2 + $0xb0] sm:$0xff]
        %v1486 = vld [vmem:[#allocation2 + $0xb8] sm:$0xff]
        %v1487 = vld [vmem:[#allocation2 + $0xc0] sm:$0xff]
        %v1488 = vld [vmem:[#allocation2 + $0xc8] sm:$0xff]
        %v1489 = vld [vmem:[#allocation2 + $0xd0] sm:$0xff]
        %v1490 = vld [vmem:[#allocation2 + $0xd8] sm:$0xff]
        %v1491 = vld [vmem:[#allocation2 + $0xe0] sm:$0xff]
        %v1492 = vld [vmem:[#allocation2 + $0xe8] sm:$0xff]
        %v1493 = vld [vmem:[#allocation2 + $0xf0] sm:$0xff]
        %v1494 = vld [vmem:[#allocation2 + $0xf8] sm:$0xff]
        %1495 = vmatprep.subr.mxu0 0.0
        %1496 = vmatpush1.msra.mxu0 %v1463
        %1497 = vmatprep.subr.mxu0 0.0
        %1498 = vmatpush1.msra.mxu0 %v1464
        %1499 = vmatprep.subr.mxu0 0.0
        %1500 = vmatpush1.msra.mxu0 %v1465
        %1501 = vmatprep.subr.mxu0 0.0
        %1502 = vmatpush1.msra.mxu0 %v1466
        %1503 = vmatprep.subr.mxu0 0.0
        %1504 = vmatpush1.msra.mxu0 %v1467
        %1505 = vmatprep.subr.mxu0 0.0
        %1506 = vmatpush1.msra.mxu0 %v1468
        %1507 = vmatprep.subr.mxu0 0.0
        %1508 = vmatpush1.msra.mxu0 %v1469
        %1509 = vmatprep.subr.mxu0 0.0
        %1510 = vmatpush1.msra.mxu0 %v1470
        %1511 = vmatprep.subr.mxu0 0.0
        %1512 = vmatpush1.msra.mxu0 %v1471
        %1513 = vmatprep.subr.mxu0 0.0
        %1514 = vmatpush1.msra.mxu0 %v1472
        %1515 = vmatprep.subr.mxu0 0.0
        %1516 = vmatpush1.msra.mxu0 %v1473
        %1517 = vmatprep.subr.mxu0 0.0
        %1518 = vmatpush1.msra.mxu0 %v1474
        %1519 = vmatprep.subr.mxu0 0.0
        %1520 = vmatpush1.msra.mxu0 %v1475
        %1521 = vmatprep.subr.mxu0 0.0
        %1522 = vmatpush1.msra.mxu0 %v1476
        %1523 = vmatprep.subr.mxu0 0.0
        %1524 = vmatpush1.msra.mxu0 %v1477
        %1525 = vmatprep.subr.mxu0 0.0
        %1526 = vmatpush1.msra.mxu0 %v1478
        %1527 = vmatprep.subr.mxu0 0.0
        %1528 = vmatpush1.msra.mxu0 %v1479
        %1529 = vmatprep.subr.mxu0 0.0
        %1530 = vmatpush1.msra.mxu0 %v1480
        %1531 = vmatprep.subr.mxu0 0.0
        %1532 = vmatpush1.msra.mxu0 %v1481
        %1533 = vmatprep.subr.mxu0 0.0
        %1534 = vmatpush1.msra.mxu0 %v1482
        %1535 = vmatprep.subr.mxu0 0.0
        %1536 = vmatpush1.msra.mxu0 %v1483
        %1537 = vmatprep.subr.mxu0 0.0
        %1538 = vmatpush1.msra.mxu0 %v1484
        %1539 = vmatprep.subr.mxu0 0.0
        %1540 = vmatpush1.msra.mxu0 %v1485
        %1541 = vmatprep.subr.mxu0 0.0
        %1542 = vmatpush1.msra.mxu0 %v1486
        %1543 = vmatprep.subr.mxu0 0.0
        %1544 = vmatpush1.msra.mxu0 %v1487
        %1545 = vmatprep.subr.mxu0 0.0
        %1546 = vmatpush1.msra.mxu0 %v1488
        %1547 = vmatprep.subr.mxu0 0.0
        %1548 = vmatpush1.msra.mxu0 %v1489
        %1549 = vmatprep.subr.mxu0 0.0
        %1550 = vmatpush1.msra.mxu0 %v1490
        %1551 = vmatprep.subr.mxu0 0.0
        %1552 = vmatpush1.msra.mxu0 %v1491
        %1553 = vmatprep.subr.mxu0 0.0
        %1554 = vmatpush1.msra.mxu0 %v1492
        %1555 = vmatprep.subr.mxu0 0.0
        %1556 = vmatpush1.msra.mxu0 %v1493
        %1557 = vmatprep.subr.mxu0 0.0
        %1558 = vmatpush1.msra.mxu0 %v1494
        %1559 = vmatprep.mubr.f32.mxu0 %v1432
        %1560 = vmatmul.mubr.f32.gmra.mrb[0].mxu0 %v1431
        %v1561 = vpop.f32.mrb[0].mxu0
        %v1562 = vadd.f32 0.0, %v1561
        %v1563 = vpop.f32.mrb[0].mxu0
        %1564 = vmatprep.mubr.f32.mxu0 %v1434
        %1565 = vmatmul.mubr.f32.gmra.mrb[0].mxu0 %v1433
        %v1566 = vpop.f32.mrb[0].mxu0
        %v1567 = vadd.f32 0.0, %v1566
        %v1568 = vpop.f32.mrb[0].mxu0
        %1569 = vmatprep.mubr.f32.mxu0 %v1436
        %1570 = vmatmul.mubr.f32.gmra.mrb[0].mxu0 %v1435
        %v1571 = vpop.f32.mrb[0].mxu0
        %v1572 = vadd.f32 0.0, %v1571
        %v1573 = vpop.f32.mrb[0].mxu0
        %1574 = vmatprep.mubr.f32.mxu0 %v1438
        %1575 = vmatmul.mubr.f32.gmra.mrb[0].mxu0 %v1437
        %v1576 = vpop.f32.mrb[0].mxu0
        %v1577 = vadd.f32 0.0, %v1576
        %v1578 = vpop.f32.mrb[0].mxu0
        %1579 = vmatprep.mubr.f32.mxu0 %v1440
        %1580 = vmatmul.mubr.f32.gmra.mrb[0].mxu0 %v1439
        %v1581 = vpop.f32.mrb[0].mxu0
        %v1582 = vadd.f32 0.0, %v1581
        %v1583 = vpop.f32.mrb[0].mxu0
        %1584 = vmatprep.mubr.f32.mxu0 %v1442
        %1585 = vmatmul.mubr.f32.gmra.mrb[0].mxu0 %v1441
        %v1586 = vpop.f32.mrb[0].mxu0
        %v1587 = vadd.f32 0.0, %v1586
        %v1588 = vpop.f32.mrb[0].mxu0
        %1589 = vmatprep.mubr.f32.mxu0 %v1444
        %1590 = vmatmul.mubr.f32.gmra.mrb[0].mxu0 %v1443
        %v1591 = vpop.f32.mrb[0].mxu0
        %v1592 = vadd.f32 0.0, %v1591
        %v1593 = vpop.f32.mrb[0].mxu0
        %1594 = vmatprep.mubr.f32.mxu0 %v1446
        %1595 = vmatmul.mubr.f32.gmra.mrb[0].mxu0 %v1445
        %v1596 = vpop.f32.mrb[0].mxu0
        %v1597 = vadd.f32 0.0, %v1596
        %v1598 = vpop.f32.mrb[0].mxu0
        %1599 = vmatprep.mubr.f32.mxu0 %v1448
        %1600 = vmatmul.mubr.f32.gmra.mrb[0].mxu0 %v1447
        %v1601 = vpop.f32.mrb[0].mxu0
        %v1602 = vadd.f32 0.0, %v1601
        %v1603 = vpop.f32.mrb[0].mxu0
        %1604 = vmatprep.mubr.f32.mxu0 %v1450
        %1605 = vmatmul.mubr.f32.gmra.mrb[0].mxu0 %v1449
        %v1606 = vpop.f32.mrb[0].mxu0
        %v1607 = vadd.f32 0.0, %v1606
        %v1608 = vpop.f32.mrb[0].mxu0
        %1609 = vmatprep.mubr.f32.mxu0 %v1452
        %1610 = vmatmul.mubr.f32.gmra.mrb[0].mxu0 %v1451
        %v1611 = vpop.f32.mrb[0].mxu0
        %v1612 = vadd.f32 0.0, %v1611
        %v1613 = vpop.f32.mrb[0].mxu0
        %1614 = vmatprep.mubr.f32.mxu0 %v1454
        %1615 = vmatmul.mubr.f32.gmra.mrb[0].mxu0 %v1453
        %v1616 = vpop.f32.mrb[0].mxu0
        %v1617 = vadd.f32 0.0, %v1616
        %v1618 = vpop.f32.mrb[0].mxu0
        %1619 = vmatprep.mubr.f32.mxu0 %v1456
        %1620 = vmatmul.mubr.f32.gmra.mrb[0].mxu0 %v1455
        %v1621 = vpop.f32.mrb[0].mxu0
        %v1622 = vadd.f32 0.0, %v1621
        %v1623 = vpop.f32.mrb[0].mxu0
        %1624 = vmatprep.mubr.f32.mxu0 %v1458
        %1625 = vmatmul.mubr.f32.gmra.mrb[0].mxu0 %v1457
        %v1626 = vpop.f32.mrb[0].mxu0
        %v1627 = vadd.f32 0.0, %v1626
        %v1628 = vpop.f32.mrb[0].mxu0
        %1629 = vmatprep.mubr.f32.mxu0 %v1460
        %1630 = vmatmul.mubr.f32.gmra.mrb[0].mxu0 %v1459
        %v1631 = vpop.f32.mrb[0].mxu0
        %v1632 = vadd.f32 0.0, %v1631
        %v1633 = vpop.f32.mrb[0].mxu0
        %1634 = vmatprep.mubr.f32.mxu0 %v1462
        %1635 = vmatmul.mubr.f32.gmra.mrb[0].mxu0 %v1461
        %v1636 = vpop.f32.mrb[0].mxu0
        %v1637 = vadd.f32 0.0, %v1636
        %v1638 = vpop.f32.mrb[0].mxu0
        %1639 = vdwg.mxu0
        %s1640 = scalar_lea.vmem %s239, %s835 [#allocation6]
        %v1641 = vld [vmem:[%s1640] sm:$0xff]
        %v1642 = vld [vmem:[%s1640 + $0x8] sm:$0xff]
        %v1643 = vld [vmem:[%s1640 + $0x10] sm:$0xff]
        %v1644 = vld [vmem:[%s1640 + $0x18] sm:$0xff]
        %v1645 = vld [vmem:[%s1640 + $0x20] sm:$0xff]
        %v1646 = vld [vmem:[%s1640 + $0x28] sm:$0xff]
        %v1647 = vld [vmem:[%s1640 + $0x30] sm:$0xff]
        %v1648 = vld [vmem:[%s1640 + $0x38] sm:$0xff]
        %v1649 = vld [vmem:[%s1640 + $0x40] sm:$0xff]
        %v1650 = vld [vmem:[%s1640 + $0x48] sm:$0xff]
        %v1651 = vld [vmem:[%s1640 + $0x50] sm:$0xff]
        %v1652 = vld [vmem:[%s1640 + $0x58] sm:$0xff]
        %v1653 = vld [vmem:[%s1640 + $0x60] sm:$0xff]
        %v1654 = vld [vmem:[%s1640 + $0x68] sm:$0xff]
        %v1655 = vld [vmem:[%s1640 + $0x70] sm:$0xff]
        %v1656 = vld [vmem:[%s1640 + $0x78] sm:$0xff]
        %s1657 = sld [smem:[#allocation5]]
        %v1658 = vstv %s1657
        %v1659 = vmul.f32 %v1658, %v1562
        %v1660 = vmul.f32 %v1658, %v1567
        %v1661 = vmul.f32 %v1658, %v1572
        %v1662 = vmul.f32 %v1658, %v1577
        %v1663 = vmul.f32 %v1658, %v1582
        %v1664 = vmul.f32 %v1658, %v1587
        %v1665 = vmul.f32 %v1658, %v1592
        %v1666 = vmul.f32 %v1658, %v1597
        %v1667 = vmul.f32 %v1658, %v1602
        %v1668 = vmul.f32 %v1658, %v1607
        %v1669 = vmul.f32 %v1658, %v1612
        %v1670 = vmul.f32 %v1658, %v1617
        %v1671 = vmul.f32 %v1658, %v1622
        %v1672 = vmul.f32 %v1658, %v1627
        %v1673 = vmul.f32 %v1658, %v1632
        %v1674 = vmul.f32 %v1658, %v1637
        %v1675 = vadd.f32 %v1659, %v1641
        %v1676 = vadd.f32 %v1660, %v1642
        %v1677 = vadd.f32 %v1661, %v1643
        %v1678 = vadd.f32 %v1662, %v1644
        %v1679 = vadd.f32 %v1663, %v1645
        %v1680 = vadd.f32 %v1664, %v1646
        %v1681 = vadd.f32 %v1665, %v1647
        %v1682 = vadd.f32 %v1666, %v1648
        %v1683 = vadd.f32 %v1667, %v1649
        %v1684 = vadd.f32 %v1668, %v1650
        %v1685 = vadd.f32 %v1669, %v1651
        %v1686 = vadd.f32 %v1670, %v1652
        %v1687 = vadd.f32 %v1671, %v1653
        %v1688 = vadd.f32 %v1672, %v1654
        %v1689 = vadd.f32 %v1673, %v1655
        %v1690 = vadd.f32 %v1674, %v1656
        %1691 = vst [vmem:[%s263] sm:$0xff] %v1675
        %1692 = vst [vmem:[%s263 + $0x8] sm:$0xff] %v1676
        %1693 = vst [vmem:[%s263 + $0x10] sm:$0xff] %v1677
        %1694 = vst [vmem:[%s263 + $0x18] sm:$0xff] %v1678
        %1695 = vst [vmem:[%s263 + $0x20] sm:$0xff] %v1679
        %1696 = vst [vmem:[%s263 + $0x28] sm:$0xff] %v1680
        %1697 = vst [vmem:[%s263 + $0x30] sm:$0xff] %v1681
        %1698 = vst [vmem:[%s263 + $0x38] sm:$0xff] %v1682
        %1699 = vst [vmem:[%s263 + $0x40] sm:$0xff] %v1683
        %1700 = vst [vmem:[%s263 + $0x48] sm:$0xff] %v1684
        %1701 = vst [vmem:[%s263 + $0x50] sm:$0xff] %v1685
        %1702 = vst [vmem:[%s263 + $0x58] sm:$0xff] %v1686
        %1703 = vst [vmem:[%s263 + $0x60] sm:$0xff] %v1687
        %1704 = vst [vmem:[%s263 + $0x68] sm:$0xff] %v1688
        %1705 = vst [vmem:[%s263 + $0x70] sm:$0xff] %v1689
        %1706 = vst [vmem:[%s263 + $0x78] sm:$0xff] %v1690
        %s1707 = sand.u32 %s138, 1
        %s1708 = scalar_lea.sflag [#allocation8], %s1707
        %s1709 = sand.u32 %s138, 1
        %s1710 = smul.addr %s1709, 128
        %s1711 = scalar_lea.vmem [#allocation9], %s1710
        %s1712 = sand.u32 %s166, 1
        %s1713 = scalar_lea.sflag [#allocation11], %s1712
        %s1714 = sand.u32 %s166, 1
        %s1715 = smul.addr %s1714, 256
        %s1716 = scalar_lea.vmem [#allocation10], %s1715
        // Predicated region
        $region45: #{tpu_custom_call.1} parent=35 // pred_check
          %p1717 = pneg %p148
        $region46: #{tpu_custom_call.1} parent=35 // pred_check_branch
          %1719 = sbr.rel (%p1717) target = $region48
        $region47: #{tpu_custom_call.1} parent=35 // pred_region
          %s1720 = smul.u32 16, %s32
          %s1722 = ssub.s32 2048, 2048
          %1723 = vsyncadd %s1708, %s1722
          %s1724 = smul.addr %s31, 32
          %s1725 = sadd.s32 %s1720, %s1724
          %s1726 = smul.addr %s1725, 128
          %s1727 = scalar_lea.hbm %s4, %s1726
          %s1728 = sshll.u32 %s1711, 4
          %s1729 = int_to_ptr.vmem [resolvable:$true] %s1728
          %1734 = dma.vmem_to_hbm [thread:$0]  %s1729, 2048, %s1727, %s1708, 128, 128, 8
        $region48: #{tpu_custom_call.1} parent=35 // pred_fallthru
          _
        // Predicated region
        $region49: #{tpu_custom_call.1} parent=35 // pred_check
          %p1735 = pneg %p176
        $region50: #{tpu_custom_call.1} parent=35 // pred_check_branch
          %1737 = sbr.rel (%p1735) target = $region52
        $region51: #{tpu_custom_call.1} parent=35 // pred_region
          %s1738 = smul.u32 16, %s32
          %s1740 = ssub.s32 4096, 4096
          %1741 = vsyncadd %s1713, %s1740
          %s1742 = smul.addr %s1738, 2
          %s1743 = smul.addr %s31, 64
          %s1744 = sadd.s32 %s1742, %s1743
          %s1745 = smul.addr %s1744, 128
          %s1746 = scalar_lea.hbm %s5, %s1745
          %s1747 = sshll.u32 %s1716, 4
          %s1748 = int_to_ptr.vmem [resolvable:$true] %s1747
          %1753 = dma.vmem_to_hbm [thread:$0]  %s1748, 4096, %s1746, %s1713, 256, 256, 16
        $region52: #{tpu_custom_call.1} parent=35 // pred_fallthru
          _
      $region36: #{tpu_custom_call.1} parent=5 // pred_fallthru
        _
      %p1754 = scmp.le.s32.totalorder 2, %s22
      // Predicated region
      $region53: #{tpu_custom_call.1} parent=5 // pred_check
        %p1755 = pneg %p1754
      $region54: #{tpu_custom_call.1} parent=5 // pred_check_branch
        %1757 = sbr.rel (%p1755) target = $region56
      $region55: #{tpu_custom_call.1} parent=5 // pred_region
        %s1758 = ssub.s32 %s22, 2
        // Predicated region
        $region57: #{tpu_custom_call.1} parent=55 // pred_check
          %p1759 = pneg %p154
        $region58: #{tpu_custom_call.1} parent=55 // pred_check_branch
          %1761 = sbr.rel (%p1759) target = $region60
        $region59: #{tpu_custom_call.1} parent=55 // pred_region
          %s1762 = sand.u32 %s139, 1
          %s1763 = scalar_lea.sflag [#allocation8], %s1762
          %s1764 = sand.u32 %s139, 1
          %s1765 = smul.addr %s1764, 128
          %s1766 = scalar_lea.vmem [#allocation9], %s1765
          %1767 = dma.done %s1763, 2048
        $region60: #{tpu_custom_call.1} parent=55 // pred_fallthru
          _
        // Predicated region
        $region61: #{tpu_custom_call.1} parent=55 // pred_check
          %p1768 = pneg %p182
        $region62: #{tpu_custom_call.1} parent=55 // pred_check_branch
          %1770 = sbr.rel (%p1768) target = $region64
        $region63: #{tpu_custom_call.1} parent=55 // pred_region
          %s1771 = sand.u32 %s167, 1
          %s1772 = scalar_lea.sflag [#allocation11], %s1771
          %s1773 = sand.u32 %s167, 1
          %s1774 = smul.addr %s1773, 256
          %s1775 = scalar_lea.vmem [#allocation10], %s1774
          %1776 = dma.done %s1772, 4096
        $region64: #{tpu_custom_call.1} parent=55 // pred_fallthru
          _
      $region56: #{tpu_custom_call.1} parent=5 // pred_fallthru
        _
    $region6: #{tpu_custom_call.1} parent=1 // loop_footer
      %s26 = sadd.s32 1, %s22
    $region7: #{tpu_custom_call.1} parent=1 // loop_footer_branch
      %21 = sbr.rel target = $region3
    $region8: #{tpu_custom_call.1} parent=1 // loop_exit
      _
    %1777 = vsyncpa [#allocation7], 1
    %s1778 = scalar_lea.sflag [#allocation7], 1
    %1779 = vsyncpa %s1778, 1
    %1780 = vsyncpa [#allocation8], 1
    %s1781 = scalar_lea.sflag [#allocation8], 1
    %1782 = vsyncpa %s1781, 1
    %1783 = vsyncpa [#allocation11], 1
    %s1784 = scalar_lea.sflag [#allocation11], 1
    %1785 = vsyncpa %s1784, 1

</llo_original>
